<compile_context>
chip_gen: v7x
topology: tpu7x:2x2x1
jax: 0.10.0
libtpu: 0.0.40
codegen_flags: <defaults>
</compile_context>

<pallas_src>
import functools

import jax
import jax.numpy as jnp
from jax.experimental import pallas as pl
from jax.experimental.pallas import tpu as pltpu


def lstm_seq_kernel(xwb_ref, slab_ref, out_ref, *, future):
    """Full-sequence LSTM + linear head, single program (no grid).

    xwb_ref  : (T, B, 4H) f32  precomputed x_t * w_ih + (b_ih + b_hh),
                               PyTorch gate order (i, f, g, o)
    slab_ref : (2H+8, 4H) f32  packed params:
                 rows [0, H)    : w_hh^T                      (TF recurrence)
                 rows [H, 2H)   : W_eff = w_hh^T + w_out^T@w_ih_row  (AR steps)
                 row  2H        : b_eff = b + b_out*w_ih_row  (AR bias)
                 row  2H+1      : w_out (lanes [0, H), rest 0)
                 row  2H+2      : b_out broadcast across all lanes
                 rows 2H+3..    : zero padding (sublane alignment)
    out_ref  : (B, T+future) f32
    """
    T, B, G = xwb_ref.shape
    H = G // 4

    w_hh_t = slab_ref[0:H, :]                       # (H, 4H)
    tail = slab_ref[2 * H:2 * H + 8, :]             # (8, 4H), sublane-aligned
    w_out_h = tail[1:2, 0:H]                        # (1, H)
    b_out = tail[2:3, 0:1]                          # (1, 1)

    def step(pre, h, c, w):
        # One (B,H)x(H,4H) MXU matmul on the per-step critical path.
        gates = pre + jnp.dot(h, w, preferred_element_type=jnp.float32)
        # Full-vreg EUP dispatches; slice the results, not the inputs.
        sig = jax.nn.sigmoid(gates)                 # (B, 4H)
        tnh = jnp.tanh(gates)                       # (B, 4H)
        i_g = sig[:, 0:H]
        f_g = sig[:, H:2 * H]
        g_g = tnh[:, 2 * H:3 * H]
        o_g = sig[:, 3 * H:4 * H]
        c_new = f_g * c + i_g * g_g
        h_new = o_g * jnp.tanh(c_new)
        return h_new, c_new

    h = jnp.zeros((B, H), jnp.float32)
    c = jnp.zeros((B, H), jnp.float32)

    # Teacher-forced pass over the observed sequence (statically unrolled).
    h_hist = []
    for t in range(T):
        h, c = step(xwb_ref[t], h, c, w_hh_t)
        h_hist.append(h)

    # Autoregressive "future" steps: the linear-head feedback is folded into
    # W_eff / b_eff, so each step is just another h @ W matmul + gate math.
    # TODO(synk): the PyTorch branch `if y is not None and random.random() > 0.5`
    # (stochastic teacher forcing) has no deterministic Pallas equivalent; only
    # the pure autoregressive path is implemented here.
    if future > 0:
        w_eff = slab_ref[H:2 * H, :]                # (H, 4H)
        b_eff = tail[0:1, :]                        # (1, 4H), broadcasts over B
        for _ in range(future):
            h, c = step(b_eff, h, c, w_eff)
            h_hist.append(h)

    # One batched output projection for ALL T+future steps, then a single
    # lane-dense-ish store of the whole prediction tile.
    hs = jnp.stack(h_hist, axis=1)                                  # (B, T+F, H)
    out_ref[...] = jnp.sum(hs * w_out_h[None, :, :], axis=-1) + b_out


def ts_rnn_forward(x, params, future=0):
    """Pallas-backed equivalent of Model.forward(input, future)."""
    B, T = x.shape
    H = params["w_hh"].shape[1]                     # w_hh: (4H, H)
    G = 4 * H

    # --- parameter prep (plain-JAX glue, PyTorch gate order kept) ----------
    w_ih_row = params["w_ih"].reshape(1, G).astype(jnp.float32)     # (1, 4H)
    w_hh_t = params["w_hh"].T.astype(jnp.float32)                   # (H, 4H)
    b_row = (params["b_ih"] + params["b_hh"]).reshape(1, G).astype(jnp.float32)
    w_out_row = params["w_out"].reshape(1, H).astype(jnp.float32)   # (1, H)
    w_out_col = params["w_out"].reshape(H, 1).astype(jnp.float32)   # (H, 1)
    b_out = params["b_out"].reshape(1, 1).astype(jnp.float32)       # (1, 1)

    # Fold the autoregressive feedback (out_t = h@w_out^T + b_out fed back as
    # the next input) into the recurrent weights: rank-1 update, f32.
    w_eff = w_hh_t + w_out_col * w_ih_row                           # (H, 4H)
    b_eff = b_row + b_out * w_ih_row                                # (1, 4H)

    # Pack all small params into ONE slab -> a single kernel-entry DMA.
    w_out_pad = jnp.concatenate(
        [w_out_row, jnp.zeros((1, G - H), jnp.float32)], axis=1)    # (1, 4H)
    b_out_row = jnp.broadcast_to(b_out, (1, G)).astype(jnp.float32)  # (1, 4H)
    pad_rows = jnp.zeros((5, G), jnp.float32)                       # sublane pad
    slab = jnp.concatenate(
        [w_hh_t, w_eff, b_eff, w_out_pad, b_out_row, pad_rows], axis=0)
    # slab: (2H + 8, 4H)

    # Hoist the whole input-gate contribution out of the recurrence:
    # xwb[t, n, :] = x[n, t] * w_ih + (b_ih + b_hh)   (input_size == 1)
    xwb = (x.T.astype(jnp.float32)[:, :, None] * w_ih_row[None, :, :]
           + b_row[None, :, :])                                     # (T, B, 4H)

    kernel = functools.partial(lstm_seq_kernel, future=future)

    return pl.pallas_call(
        kernel,
        out_shape=jax.ShapeDtypeStruct((B, T + future), jnp.float32),
        in_specs=[pl.BlockSpec(memory_space=pltpu.MemorySpace.VMEM)] * 2,
        out_specs=pl.BlockSpec(memory_space=pltpu.MemorySpace.VMEM),
    )(xwb, slab)


def ts_rnn_reference(x, params, future=0):
    """Pure-JAX reference (mirrors the PyTorch forward) for validation."""
    B, T = x.shape
    H = params["w_hh"].shape[1]
    w_ih_t = params["w_ih"].T
    w_hh_t = params["w_hh"].T
    b = (params["b_ih"] + params["b_hh"]).reshape(1, 4 * H)
    w_out = params["w_out"].T
    b_out = params["b_out"].reshape(1, 1)

    def cell(x_t, h, c):
        gates = x_t @ w_ih_t + h @ w_hh_t + b
        i_g = jax.nn.sigmoid(gates[:, 0:H])
        f_g = jax.nn.sigmoid(gates[:, H:2 * H])
        g_g = jnp.tanh(gates[:, 2 * H:3 * H])
        o_g = jax.nn.sigmoid(gates[:, 3 * H:4 * H])
        c_n = f_g * c + i_g * g_g
        h_n = o_g * jnp.tanh(c_n)
        return h_n, c_n

    h = jnp.zeros((B, H), jnp.float32)
    c = jnp.zeros((B, H), jnp.float32)
    outs = []
    out_t = jnp.zeros((B, 1), jnp.float32)
    for t in range(T):
        h, c = cell(x[:, t:t + 1], h, c)
        out_t = h @ w_out + b_out
        outs.append(out_t)
    for _ in range(future):
        h, c = cell(out_t, h, c)
        out_t = h @ w_out + b_out
        outs.append(out_t)
    return jnp.concatenate(outs, axis=1)


def init_params(key, input_size, hidden_size, output_size):
    """Deterministic init mimicking PyTorch's U(-1/sqrt(H), 1/sqrt(H))."""
    k = 1.0 / jnp.sqrt(jnp.float32(hidden_size))
    keys = jax.random.split(key, 6)
    u = lambda kk, shape: jax.random.uniform(kk, shape, jnp.float32, -k, k)
    return {
        "w_ih": u(keys[0], (4 * hidden_size, input_size)),    # LSTMCell weight_ih
        "w_hh": u(keys[1], (4 * hidden_size, hidden_size)),   # LSTMCell weight_hh
        "b_ih": u(keys[2], (4 * hidden_size,)),
        "b_hh": u(keys[3], (4 * hidden_size,)),
        "w_out": u(keys[4], (output_size, hidden_size)),      # nn.Linear weight
        "b_out": u(keys[5], (output_size,)),
    }


if __name__ == "__main__":
    # Small shapes consistent with the module: input_size=1, output_size=1.
    batch, seq_len, hidden = 2, 8, 32
    input_size, output_size = 1, 1
    future = 3

    key = jax.random.PRNGKey(0)
    pkey, xkey = jax.random.split(key)
    params = init_params(pkey, input_size, hidden, output_size)
    x = jax.random.normal(xkey, (batch, seq_len), jnp.float32)

    out = ts_rnn_forward(x, params, future=future)
    out = jax.block_until_ready(out)

    ref = ts_rnn_reference(x, params, future=future)
    assert out.shape == (batch, seq_len + future), out.shape
    assert jnp.allclose(out, ref, atol=2e-5, rtol=1e-5), (
        "mismatch vs reference: max abs err = "
        f"{float(jnp.max(jnp.abs(out - ref)))}")

    # Also check the future=0 path (AR branch statically elided).
    out0 = jax.block_until_ready(ts_rnn_forward(x, params, future=0))
    ref0 = ts_rnn_reference(x, params, future=0)
    assert jnp.allclose(out0, ref0, atol=2e-5, rtol=1e-5)

    print("KERNEL_OK")
</pallas_src>

<mosaic_0001>
module attributes {stable_mosaic.version = 11 : i64} {
  func.func @lstm_seq_kernel(%arg0: memref<8x2x128xf32, #tpu.memory_space<vmem>>, %arg1: memref<72x128xf32, #tpu.memory_space<vmem>>, %arg2: memref<2x11xf32, #tpu.memory_space<vmem>>) attributes {dimension_semantics = [], scalar_prefetch = 0 : i64, scratch_operands = 0 : i64, tpu.core_type = #tpu.core_type<tc>} {
    %c0 = arith.constant 0 : index
    %c0_0 = arith.constant 0 : index
    %0 = vector.load %arg1[%c0, %c0_0] : memref<72x128xf32, #tpu.memory_space<vmem>>, vector<32x128xf32>
    %c64 = arith.constant 64 : index
    %c0_1 = arith.constant 0 : index
    %1 = vector.load %arg1[%c64, %c0_1] : memref<72x128xf32, #tpu.memory_space<vmem>>, vector<8x128xf32>
    %2 = vector.extract_strided_slice %1 {offsets = [1, 0], sizes = [1, 32], strides = [1, 1]} : vector<8x128xf32> to vector<1x32xf32>
    %3 = vector.extract_strided_slice %1 {offsets = [2, 0], sizes = [1, 1], strides = [1, 1]} : vector<8x128xf32> to vector<1x1xf32>
    %cst = arith.constant 0.000000e+00 : f32
    %4 = vector.broadcast %cst : f32 to vector<2x32xf32>
    %cst_2 = arith.constant 0.000000e+00 : f32
    %5 = vector.broadcast %cst_2 : f32 to vector<2x32xf32>
    %c0_3 = arith.constant 0 : index
    %c0_4 = arith.constant 0 : index
    %c0_5 = arith.constant 0 : index
    %6 = vector.load %arg0[%c0_3, %c0_4, %c0_5] : memref<8x2x128xf32, #tpu.memory_space<vmem>>, vector<1x2x128xf32>
    %7 = vector.shape_cast %6 : vector<1x2x128xf32> to vector<2x128xf32>
    %cst_6 = arith.constant dense<0.000000e+00> : vector<2x128xf32>
    %8 = tpu.matmul %4, %0, %cst_6 {dimension_numbers = #tpu.dot_dimension_numbers<[1], [0], [0], [1], [0, 0, 1, 1], [], []>} : vector<2x32xf32>, vector<32x128xf32>, vector<2x128xf32> -> vector<2x128xf32>
    %9 = arith.addf %7, %8 : vector<2x128xf32>
    %10 = arith.negf %9 : vector<2x128xf32>
    %11 = math.exp %10 : vector<2x128xf32>
    %cst_7 = arith.constant 1.000000e+00 : f32
    %12 = vector.broadcast %cst_7 : f32 to vector<2x128xf32>
    %13 = arith.addf %12, %11 : vector<2x128xf32>
    %14 = arith.divf %12, %13 : vector<2x128xf32>
    %15 = math.tanh %9 : vector<2x128xf32>
    %16 = vector.extract_strided_slice %14 {offsets = [0, 0], sizes = [2, 32], strides = [1, 1]} : vector<2x128xf32> to vector<2x32xf32>
    %17 = vector.extract_strided_slice %14 {offsets = [0, 32], sizes = [2, 32], strides = [1, 1]} : vector<2x128xf32> to vector<2x32xf32>
    %18 = vector.extract_strided_slice %15 {offsets = [0, 64], sizes = [2, 32], strides = [1, 1]} : vector<2x128xf32> to vector<2x32xf32>
    %19 = vector.extract_strided_slice %14 {offsets = [0, 96], sizes = [2, 32], strides = [1, 1]} : vector<2x128xf32> to vector<2x32xf32>
    %20 = arith.mulf %17, %5 : vector<2x32xf32>
    %21 = arith.mulf %16, %18 : vector<2x32xf32>
    %22 = arith.addf %20, %21 : vector<2x32xf32>
    %23 = math.tanh %22 : vector<2x32xf32>
    %24 = arith.mulf %19, %23 : vector<2x32xf32>
    %c1 = arith.constant 1 : index
    %c0_8 = arith.constant 0 : index
    %c0_9 = arith.constant 0 : index
    %25 = vector.load %arg0[%c1, %c0_8, %c0_9] : memref<8x2x128xf32, #tpu.memory_space<vmem>>, vector<1x2x128xf32>
    %26 = vector.shape_cast %25 : vector<1x2x128xf32> to vector<2x128xf32>
    %cst_10 = arith.constant dense<0.000000e+00> : vector<2x128xf32>
    %27 = tpu.matmul %24, %0, %cst_10 {dimension_numbers = #tpu.dot_dimension_numbers<[1], [0], [0], [1], [0, 0, 1, 1], [], []>} : vector<2x32xf32>, vector<32x128xf32>, vector<2x128xf32> -> vector<2x128xf32>
    %28 = arith.addf %26, %27 : vector<2x128xf32>
    %29 = arith.negf %28 : vector<2x128xf32>
    %30 = math.exp %29 : vector<2x128xf32>
    %cst_11 = arith.constant 1.000000e+00 : f32
    %31 = vector.broadcast %cst_11 : f32 to vector<2x128xf32>
    %32 = arith.addf %31, %30 : vector<2x128xf32>
    %33 = arith.divf %31, %32 : vector<2x128xf32>
    %34 = math.tanh %28 : vector<2x128xf32>
    %35 = vector.extract_strided_slice %33 {offsets = [0, 0], sizes = [2, 32], strides = [1, 1]} : vector<2x128xf32> to vector<2x32xf32>
    %36 = vector.extract_strided_slice %33 {offsets = [0, 32], sizes = [2, 32], strides = [1, 1]} : vector<2x128xf32> to vector<2x32xf32>
    %37 = vector.extract_strided_slice %34 {offsets = [0, 64], sizes = [2, 32], strides = [1, 1]} : vector<2x128xf32> to vector<2x32xf32>
    %38 = vector.extract_strided_slice %33 {offsets = [0, 96], sizes = [2, 32], strides = [1, 1]} : vector<2x128xf32> to vector<2x32xf32>
    %39 = arith.mulf %36, %22 : vector<2x32xf32>
    %40 = arith.mulf %35, %37 : vector<2x32xf32>
    %41 = arith.addf %39, %40 : vector<2x32xf32>
    %42 = math.tanh %41 : vector<2x32xf32>
    %43 = arith.mulf %38, %42 : vector<2x32xf32>
    %c2 = arith.constant 2 : index
    %c0_12 = arith.constant 0 : index
    %c0_13 = arith.constant 0 : index
    %44 = vector.load %arg0[%c2, %c0_12, %c0_13] : memref<8x2x128xf32, #tpu.memory_space<vmem>>, vector<1x2x128xf32>
    %45 = vector.shape_cast %44 : vector<1x2x128xf32> to vector<2x128xf32>
    %cst_14 = arith.constant dense<0.000000e+00> : vector<2x128xf32>
    %46 = tpu.matmul %43, %0, %cst_14 {dimension_numbers = #tpu.dot_dimension_numbers<[1], [0], [0], [1], [0, 0, 1, 1], [], []>} : vector<2x32xf32>, vector<32x128xf32>, vector<2x128xf32> -> vector<2x128xf32>
    %47 = arith.addf %45, %46 : vector<2x128xf32>
    %48 = arith.negf %47 : vector<2x128xf32>
    %49 = math.exp %48 : vector<2x128xf32>
    %cst_15 = arith.constant 1.000000e+00 : f32
    %50 = vector.broadcast %cst_15 : f32 to vector<2x128xf32>
    %51 = arith.addf %50, %49 : vector<2x128xf32>
    %52 = arith.divf %50, %51 : vector<2x128xf32>
    %53 = math.tanh %47 : vector<2x128xf32>
    %54 = vector.extract_strided_slice %52 {offsets = [0, 0], sizes = [2, 32], strides = [1, 1]} : vector<2x128xf32> to vector<2x32xf32>
    %55 = vector.extract_strided_slice %52 {offsets = [0, 32], sizes = [2, 32], strides = [1, 1]} : vector<2x128xf32> to vector<2x32xf32>
    %56 = vector.extract_strided_slice %53 {offsets = [0, 64], sizes = [2, 32], strides = [1, 1]} : vector<2x128xf32> to vector<2x32xf32>
    %57 = vector.extract_strided_slice %52 {offsets = [0, 96], sizes = [2, 32], strides = [1, 1]} : vector<2x128xf32> to vector<2x32xf32>
    %58 = arith.mulf %55, %41 : vector<2x32xf32>
    %59 = arith.mulf %54, %56 : vector<2x32xf32>
    %60 = arith.addf %58, %59 : vector<2x32xf32>
    %61 = math.tanh %60 : vector<2x32xf32>
    %62 = arith.mulf %57, %61 : vector<2x32xf32>
    %c3 = arith.constant 3 : index
    %c0_16 = arith.constant 0 : index
    %c0_17 = arith.constant 0 : index
    %63 = vector.load %arg0[%c3, %c0_16, %c0_17] : memref<8x2x128xf32, #tpu.memory_space<vmem>>, vector<1x2x128xf32>
    %64 = vector.shape_cast %63 : vector<1x2x128xf32> to vector<2x128xf32>
    %cst_18 = arith.constant dense<0.000000e+00> : vector<2x128xf32>
    %65 = tpu.matmul %62, %0, %cst_18 {dimension_numbers = #tpu.dot_dimension_numbers<[1], [0], [0], [1], [0, 0, 1, 1], [], []>} : vector<2x32xf32>, vector<32x128xf32>, vector<2x128xf32> -> vector<2x128xf32>
    %66 = arith.addf %64, %65 : vector<2x128xf32>
    %67 = arith.negf %66 : vector<2x128xf32>
    %68 = math.exp %67 : vector<2x128xf32>
    %cst_19 = arith.constant 1.000000e+00 : f32
    %69 = vector.broadcast %cst_19 : f32 to vector<2x128xf32>
    %70 = arith.addf %69, %68 : vector<2x128xf32>
    %71 = arith.divf %69, %70 : vector<2x128xf32>
    %72 = math.tanh %66 : vector<2x128xf32>
    %73 = vector.extract_strided_slice %71 {offsets = [0, 0], sizes = [2, 32], strides = [1, 1]} : vector<2x128xf32> to vector<2x32xf32>
    %74 = vector.extract_strided_slice %71 {offsets = [0, 32], sizes = [2, 32], strides = [1, 1]} : vector<2x128xf32> to vector<2x32xf32>
    %75 = vector.extract_strided_slice %72 {offsets = [0, 64], sizes = [2, 32], strides = [1, 1]} : vector<2x128xf32> to vector<2x32xf32>
    %76 = vector.extract_strided_slice %71 {offsets = [0, 96], sizes = [2, 32], strides = [1, 1]} : vector<2x128xf32> to vector<2x32xf32>
    %77 = arith.mulf %74, %60 : vector<2x32xf32>
    %78 = arith.mulf %73, %75 : vector<2x32xf32>
    %79 = arith.addf %77, %78 : vector<2x32xf32>
    %80 = math.tanh %79 : vector<2x32xf32>
    %81 = arith.mulf %76, %80 : vector<2x32xf32>
    %c4 = arith.constant 4 : index
    %c0_20 = arith.constant 0 : index
    %c0_21 = arith.constant 0 : index
    %82 = vector.load %arg0[%c4, %c0_20, %c0_21] : memref<8x2x128xf32, #tpu.memory_space<vmem>>, vector<1x2x128xf32>
    %83 = vector.shape_cast %82 : vector<1x2x128xf32> to vector<2x128xf32>
    %cst_22 = arith.constant dense<0.000000e+00> : vector<2x128xf32>
    %84 = tpu.matmul %81, %0, %cst_22 {dimension_numbers = #tpu.dot_dimension_numbers<[1], [0], [0], [1], [0, 0, 1, 1], [], []>} : vector<2x32xf32>, vector<32x128xf32>, vector<2x128xf32> -> vector<2x128xf32>
    %85 = arith.addf %83, %84 : vector<2x128xf32>
    %86 = arith.negf %85 : vector<2x128xf32>
    %87 = math.exp %86 : vector<2x128xf32>
    %cst_23 = arith.constant 1.000000e+00 : f32
    %88 = vector.broadcast %cst_23 : f32 to vector<2x128xf32>
    %89 = arith.addf %88, %87 : vector<2x128xf32>
    %90 = arith.divf %88, %89 : vector<2x128xf32>
    %91 = math.tanh %85 : vector<2x128xf32>
    %92 = vector.extract_strided_slice %90 {offsets = [0, 0], sizes = [2, 32], strides = [1, 1]} : vector<2x128xf32> to vector<2x32xf32>
    %93 = vector.extract_strided_slice %90 {offsets = [0, 32], sizes = [2, 32], strides = [1, 1]} : vector<2x128xf32> to vector<2x32xf32>
    %94 = vector.extract_strided_slice %91 {offsets = [0, 64], sizes = [2, 32], strides = [1, 1]} : vector<2x128xf32> to vector<2x32xf32>
    %95 = vector.extract_strided_slice %90 {offsets = [0, 96], sizes = [2, 32], strides = [1, 1]} : vector<2x128xf32> to vector<2x32xf32>
    %96 = arith.mulf %93, %79 : vector<2x32xf32>
    %97 = arith.mulf %92, %94 : vector<2x32xf32>
    %98 = arith.addf %96, %97 : vector<2x32xf32>
    %99 = math.tanh %98 : vector<2x32xf32>
    %100 = arith.mulf %95, %99 : vector<2x32xf32>
    %c5 = arith.constant 5 : index
    %c0_24 = arith.constant 0 : index
    %c0_25 = arith.constant 0 : index
    %101 = vector.load %arg0[%c5, %c0_24, %c0_25] : memref<8x2x128xf32, #tpu.memory_space<vmem>>, vector<1x2x128xf32>
    %102 = vector.shape_cast %101 : vector<1x2x128xf32> to vector<2x128xf32>
    %cst_26 = arith.constant dense<0.000000e+00> : vector<2x128xf32>
    %103 = tpu.matmul %100, %0, %cst_26 {dimension_numbers = #tpu.dot_dimension_numbers<[1], [0], [0], [1], [0, 0, 1, 1], [], []>} : vector<2x32xf32>, vector<32x128xf32>, vector<2x128xf32> -> vector<2x128xf32>
    %104 = arith.addf %102, %103 : vector<2x128xf32>
    %105 = arith.negf %104 : vector<2x128xf32>
    %106 = math.exp %105 : vector<2x128xf32>
    %cst_27 = arith.constant 1.000000e+00 : f32
    %107 = vector.broadcast %cst_27 : f32 to vector<2x128xf32>
    %108 = arith.addf %107, %106 : vector<2x128xf32>
    %109 = arith.divf %107, %108 : vector<2x128xf32>
    %110 = math.tanh %104 : vector<2x128xf32>
    %111 = vector.extract_strided_slice %109 {offsets = [0, 0], sizes = [2, 32], strides = [1, 1]} : vector<2x128xf32> to vector<2x32xf32>
    %112 = vector.extract_strided_slice %109 {offsets = [0, 32], sizes = [2, 32], strides = [1, 1]} : vector<2x128xf32> to vector<2x32xf32>
    %113 = vector.extract_strided_slice %110 {offsets = [0, 64], sizes = [2, 32], strides = [1, 1]} : vector<2x128xf32> to vector<2x32xf32>
    %114 = vector.extract_strided_slice %109 {offsets = [0, 96], sizes = [2, 32], strides = [1, 1]} : vector<2x128xf32> to vector<2x32xf32>
    %115 = arith.mulf %112, %98 : vector<2x32xf32>
    %116 = arith.mulf %111, %113 : vector<2x32xf32>
    %117 = arith.addf %115, %116 : vector<2x32xf32>
    %118 = math.tanh %117 : vector<2x32xf32>
    %119 = arith.mulf %114, %118 : vector<2x32xf32>
    %c6 = arith.constant 6 : index
    %c0_28 = arith.constant 0 : index
    %c0_29 = arith.constant 0 : index
    %120 = vector.load %arg0[%c6, %c0_28, %c0_29] : memref<8x2x128xf32, #tpu.memory_space<vmem>>, vector<1x2x128xf32>
    %121 = vector.shape_cast %120 : vector<1x2x128xf32> to vector<2x128xf32>
    %cst_30 = arith.constant dense<0.000000e+00> : vector<2x128xf32>
    %122 = tpu.matmul %119, %0, %cst_30 {dimension_numbers = #tpu.dot_dimension_numbers<[1], [0], [0], [1], [0, 0, 1, 1], [], []>} : vector<2x32xf32>, vector<32x128xf32>, vector<2x128xf32> -> vector<2x128xf32>
    %123 = arith.addf %121, %122 : vector<2x128xf32>
    %124 = arith.negf %123 : vector<2x128xf32>
    %125 = math.exp %124 : vector<2x128xf32>
    %cst_31 = arith.constant 1.000000e+00 : f32
    %126 = vector.broadcast %cst_31 : f32 to vector<2x128xf32>
    %127 = arith.addf %126, %125 : vector<2x128xf32>
    %128 = arith.divf %126, %127 : vector<2x128xf32>
    %129 = math.tanh %123 : vector<2x128xf32>
    %130 = vector.extract_strided_slice %128 {offsets = [0, 0], sizes = [2, 32], strides = [1, 1]} : vector<2x128xf32> to vector<2x32xf32>
    %131 = vector.extract_strided_slice %128 {offsets = [0, 32], sizes = [2, 32], strides = [1, 1]} : vector<2x128xf32> to vector<2x32xf32>
    %132 = vector.extract_strided_slice %129 {offsets = [0, 64], sizes = [2, 32], strides = [1, 1]} : vector<2x128xf32> to vector<2x32xf32>
    %133 = vector.extract_strided_slice %128 {offsets = [0, 96], sizes = [2, 32], strides = [1, 1]} : vector<2x128xf32> to vector<2x32xf32>
    %134 = arith.mulf %131, %117 : vector<2x32xf32>
    %135 = arith.mulf %130, %132 : vector<2x32xf32>
    %136 = arith.addf %134, %135 : vector<2x32xf32>
    %137 = math.tanh %136 : vector<2x32xf32>
    %138 = arith.mulf %133, %137 : vector<2x32xf32>
    %c7 = arith.constant 7 : index
    %c0_32 = arith.constant 0 : index
    %c0_33 = arith.constant 0 : index
    %139 = vector.load %arg0[%c7, %c0_32, %c0_33] : memref<8x2x128xf32, #tpu.memory_space<vmem>>, vector<1x2x128xf32>
    %140 = vector.shape_cast %139 : vector<1x2x128xf32> to vector<2x128xf32>
    %cst_34 = arith.constant dense<0.000000e+00> : vector<2x128xf32>
    %141 = tpu.matmul %138, %0, %cst_34 {dimension_numbers = #tpu.dot_dimension_numbers<[1], [0], [0], [1], [0, 0, 1, 1], [], []>} : vector<2x32xf32>, vector<32x128xf32>, vector<2x128xf32> -> vector<2x128xf32>
    %142 = arith.addf %140, %141 : vector<2x128xf32>
    %143 = arith.negf %142 : vector<2x128xf32>
    %144 = math.exp %143 : vector<2x128xf32>
    %cst_35 = arith.constant 1.000000e+00 : f32
    %145 = vector.broadcast %cst_35 : f32 to vector<2x128xf32>
    %146 = arith.addf %145, %144 : vector<2x128xf32>
    %147 = arith.divf %145, %146 : vector<2x128xf32>
    %148 = math.tanh %142 : vector<2x128xf32>
    %149 = vector.extract_strided_slice %147 {offsets = [0, 0], sizes = [2, 32], strides = [1, 1]} : vector<2x128xf32> to vector<2x32xf32>
    %150 = vector.extract_strided_slice %147 {offsets = [0, 32], sizes = [2, 32], strides = [1, 1]} : vector<2x128xf32> to vector<2x32xf32>
    %151 = vector.extract_strided_slice %148 {offsets = [0, 64], sizes = [2, 32], strides = [1, 1]} : vector<2x128xf32> to vector<2x32xf32>
    %152 = vector.extract_strided_slice %147 {offsets = [0, 96], sizes = [2, 32], strides = [1, 1]} : vector<2x128xf32> to vector<2x32xf32>
    %153 = arith.mulf %150, %136 : vector<2x32xf32>
    %154 = arith.mulf %149, %151 : vector<2x32xf32>
    %155 = arith.addf %153, %154 : vector<2x32xf32>
    %156 = math.tanh %155 : vector<2x32xf32>
    %157 = arith.mulf %152, %156 : vector<2x32xf32>
    %c32 = arith.constant 32 : index
    %c0_36 = arith.constant 0 : index
    %158 = vector.load %arg1[%c32, %c0_36] : memref<72x128xf32, #tpu.memory_space<vmem>>, vector<32x128xf32>
    %159 = vector.extract_strided_slice %1 {offsets = [0, 0], sizes = [1, 128], strides = [1, 1]} : vector<8x128xf32> to vector<1x128xf32>
    %cst_37 = arith.constant dense<0.000000e+00> : vector<2x128xf32>
    %160 = tpu.matmul %157, %158, %cst_37 {dimension_numbers = #tpu.dot_dimension_numbers<[1], [0], [0], [1], [0, 0, 1, 1], [], []>} : vector<2x32xf32>, vector<32x128xf32>, vector<2x128xf32> -> vector<2x128xf32>
    %161 = vector.broadcast %159 : vector<1x128xf32> to vector<2x128xf32>
    %162 = arith.addf %161, %160 : vector<2x128xf32>
    %163 = arith.negf %162 : vector<2x128xf32>
    %164 = math.exp %163 : vector<2x128xf32>
    %cst_38 = arith.constant 1.000000e+00 : f32
    %165 = vector.broadcast %cst_38 : f32 to vector<2x128xf32>
    %166 = arith.addf %165, %164 : vector<2x128xf32>
    %167 = arith.divf %165, %166 : vector<2x128xf32>
    %168 = math.tanh %162 : vector<2x128xf32>
    %169 = vector.extract_strided_slice %167 {offsets = [0, 0], sizes = [2, 32], strides = [1, 1]} : vector<2x128xf32> to vector<2x32xf32>
    %170 = vector.extract_strided_slice %167 {offsets = [0, 32], sizes = [2, 32], strides = [1, 1]} : vector<2x128xf32> to vector<2x32xf32>
    %171 = vector.extract_strided_slice %168 {offsets = [0, 64], sizes = [2, 32], strides = [1, 1]} : vector<2x128xf32> to vector<2x32xf32>
    %172 = vector.extract_strided_slice %167 {offsets = [0, 96], sizes = [2, 32], strides = [1, 1]} : vector<2x128xf32> to vector<2x32xf32>
    %173 = arith.mulf %170, %155 : vector<2x32xf32>
    %174 = arith.mulf %169, %171 : vector<2x32xf32>
    %175 = arith.addf %173, %174 : vector<2x32xf32>
    %176 = math.tanh %175 : vector<2x32xf32>
    %177 = arith.mulf %172, %176 : vector<2x32xf32>
    %cst_39 = arith.constant dense<0.000000e+00> : vector<2x128xf32>
    %178 = tpu.matmul %177, %158, %cst_39 {dimension_numbers = #tpu.dot_dimension_numbers<[1], [0], [0], [1], [0, 0, 1, 1], [], []>} : vector<2x32xf32>, vector<32x128xf32>, vector<2x128xf32> -> vector<2x128xf32>
    %179 = vector.broadcast %159 : vector<1x128xf32> to vector<2x128xf32>
    %180 = arith.addf %179, %178 : vector<2x128xf32>
    %181 = arith.negf %180 : vector<2x128xf32>
    %182 = math.exp %181 : vector<2x128xf32>
    %cst_40 = arith.constant 1.000000e+00 : f32
    %183 = vector.broadcast %cst_40 : f32 to vector<2x128xf32>
    %184 = arith.addf %183, %182 : vector<2x128xf32>
    %185 = arith.divf %183, %184 : vector<2x128xf32>
    %186 = math.tanh %180 : vector<2x128xf32>
    %187 = vector.extract_strided_slice %185 {offsets = [0, 0], sizes = [2, 32], strides = [1, 1]} : vector<2x128xf32> to vector<2x32xf32>
    %188 = vector.extract_strided_slice %185 {offsets = [0, 32], sizes = [2, 32], strides = [1, 1]} : vector<2x128xf32> to vector<2x32xf32>
    %189 = vector.extract_strided_slice %186 {offsets = [0, 64], sizes = [2, 32], strides = [1, 1]} : vector<2x128xf32> to vector<2x32xf32>
    %190 = vector.extract_strided_slice %185 {offsets = [0, 96], sizes = [2, 32], strides = [1, 1]} : vector<2x128xf32> to vector<2x32xf32>
    %191 = arith.mulf %188, %175 : vector<2x32xf32>
    %192 = arith.mulf %187, %189 : vector<2x32xf32>
    %193 = arith.addf %191, %192 : vector<2x32xf32>
    %194 = math.tanh %193 : vector<2x32xf32>
    %195 = arith.mulf %190, %194 : vector<2x32xf32>
    %cst_41 = arith.constant dense<0.000000e+00> : vector<2x128xf32>
    %196 = tpu.matmul %195, %158, %cst_41 {dimension_numbers = #tpu.dot_dimension_numbers<[1], [0], [0], [1], [0, 0, 1, 1], [], []>} : vector<2x32xf32>, vector<32x128xf32>, vector<2x128xf32> -> vector<2x128xf32>
    %197 = vector.broadcast %159 : vector<1x128xf32> to vector<2x128xf32>
    %198 = arith.addf %197, %196 : vector<2x128xf32>
    %199 = arith.negf %198 : vector<2x128xf32>
    %200 = math.exp %199 : vector<2x128xf32>
    %cst_42 = arith.constant 1.000000e+00 : f32
    %201 = vector.broadcast %cst_42 : f32 to vector<2x128xf32>
    %202 = arith.addf %201, %200 : vector<2x128xf32>
    %203 = arith.divf %201, %202 : vector<2x128xf32>
    %204 = math.tanh %198 : vector<2x128xf32>
    %205 = vector.extract_strided_slice %203 {offsets = [0, 0], sizes = [2, 32], strides = [1, 1]} : vector<2x128xf32> to vector<2x32xf32>
    %206 = vector.extract_strided_slice %203 {offsets = [0, 32], sizes = [2, 32], strides = [1, 1]} : vector<2x128xf32> to vector<2x32xf32>
    %207 = vector.extract_strided_slice %204 {offsets = [0, 64], sizes = [2, 32], strides = [1, 1]} : vector<2x128xf32> to vector<2x32xf32>
    %208 = vector.extract_strided_slice %203 {offsets = [0, 96], sizes = [2, 32], strides = [1, 1]} : vector<2x128xf32> to vector<2x32xf32>
    %209 = arith.mulf %206, %193 : vector<2x32xf32>
    %210 = arith.mulf %205, %207 : vector<2x32xf32>
    %211 = arith.addf %209, %210 : vector<2x32xf32>
    %212 = math.tanh %211 : vector<2x32xf32>
    %213 = arith.mulf %208, %212 : vector<2x32xf32>
    %214 = vector.shape_cast %24 : vector<2x32xf32> to vector<2x1x32xf32>
    %215 = vector.shape_cast %43 : vector<2x32xf32> to vector<2x1x32xf32>
    %216 = vector.shape_cast %62 : vector<2x32xf32> to vector<2x1x32xf32>
    %217 = vector.shape_cast %81 : vector<2x32xf32> to vector<2x1x32xf32>
    %218 = vector.shape_cast %100 : vector<2x32xf32> to vector<2x1x32xf32>
    %219 = vector.shape_cast %119 : vector<2x32xf32> to vector<2x1x32xf32>
    %220 = vector.shape_cast %138 : vector<2x32xf32> to vector<2x1x32xf32>
    %221 = vector.shape_cast %157 : vector<2x32xf32> to vector<2x1x32xf32>
    %222 = vector.shape_cast %177 : vector<2x32xf32> to vector<2x1x32xf32>
    %223 = vector.shape_cast %195 : vector<2x32xf32> to vector<2x1x32xf32>
    %224 = vector.shape_cast %213 : vector<2x32xf32> to vector<2x1x32xf32>
    %225 = tpu.concatenate %214, %215, %216, %217, %218, %219, %220, %221, %222, %223, %224 in 1 : vector<2x1x32xf32>, vector<2x1x32xf32>, vector<2x1x32xf32>, vector<2x1x32xf32>, vector<2x1x32xf32>, vector<2x1x32xf32>, vector<2x1x32xf32>, vector<2x1x32xf32>, vector<2x1x32xf32>, vector<2x1x32xf32>, vector<2x1x32xf32> -> vector<2x11x32xf32>
    %226 = vector.shape_cast %2 : vector<1x32xf32> to vector<1x1x32xf32>
    %227 = vector.broadcast %226 : vector<1x1x32xf32> to vector<2x11x32xf32>
    %228 = arith.mulf %225, %227 : vector<2x11x32xf32>
    %cst_43 = arith.constant dense<0.000000e+00> : vector<2x11xf32>
    %229 = vector.multi_reduction <add>, %228, %cst_43 [2] : vector<2x11x32xf32> to vector<2x11xf32>
    %230 = vector.broadcast %3 : vector<1x1xf32> to vector<2x11xf32>
    %231 = arith.addf %229, %230 : vector<2x11xf32>
    %c0_44 = arith.constant 0 : index
    %c0_45 = arith.constant 0 : index
    %232 = vector.load %arg2[%c0_44, %c0_45] : memref<2x11xf32, #tpu.memory_space<vmem>>, vector<2x11xf32>
    tpu.vector_store %arg2[%c0_44, %c0_45], %231 {strides = array<i32>} : memref<2x11xf32, #tpu.memory_space<vmem>>, vector<2x11xf32>,
    return
  }
}

</mosaic_0001>

<llo_original>
// kernel: tpu_custom_call.1
$region0: #{tpu_custom_call.1}
  #allocation0 [shape = 'u32[]', space=smem, size = 0x4, offset = 0x4, fixed_abs, tag = 'smem constant byte address 0x4 - core index']
  #allocation1 [shape = 'u32[144,128]{1,0:T(1,128)}', space=vmem, size = 0x12000, scoped, tag = 'internal scratch']
  %s0 = inlined_call_operand.hbm [shape: f32[8,2,128], index: 0, kind: input, shape index: {}]
  %s1 = inlined_call_operand.hbm [shape: f32[72,128], index: 1, kind: input, shape index: {}]
  %s2 = inlined_call_operand.hbm [shape: f32[2,11], index: 2, kind: output, shape index: {}]
  %s3 = sld [smem:[#allocation0]]
  $region26: #{tpu_custom_call.1} parent=0
    _
  %s5 = ssub.s32 1, %s3
  %s6 = scalar_select 0, %s5, %s3
  $region1: #{tpu_custom_call.1} parent=0
    #allocation2 [shape = 'u8[8192]{0}', space=vmem, size = 0x2000, scoped, tag = 'input window, operand 0, single buffered']
    #allocation3 [shape = 's32[1]{0}', space=sflag, size = 0x4, scoped, tag = 'scoped memory for tpu_custom_call.1']
    #allocation4 [shape = 's32[1]{0}', space=sflag, size = 0x4, scoped, tag = 'scoped memory for tpu_custom_call.1']
    #allocation5 [shape = 'u8[36864]{0}', space=vmem, size = 0x9000, scoped, tag = 'input window, operand 1, single buffered']
    #allocation6 [shape = 's32[1]{0}', space=sflag, size = 0x4, scoped, tag = 'scoped memory for tpu_custom_call.1']
    #allocation7 [shape = 'u8[1024]{0}', space=vmem, size = 0x400, scoped, tag = 'output window, operand 0, single buffered']
    %7 = vsyncpa [#allocation3], 0
    %8 = vsyncpa [#allocation6], 0
    %9 = vsyncpa [#allocation4], 0
    // Predicated region
    $region2: #{tpu_custom_call.1} parent=1 // pred_check
      _
    $region3: #{tpu_custom_call.1} parent=1 // pred_check_branch
      %11 = sbr.rel (0) target = $region5
    $region4: #{tpu_custom_call.1} parent=1 // pred_region
      %s13 = ssub.s32 256, 256
      %14 = vsyncadd [#allocation3], %s13
      %s15 = sshll.u32 [#allocation2], 4
      %s16 = int_to_ptr.vmem [resolvable:$true] %s15
      %21 = dma.hbm_to_vmem [thread:$0]  %s0, 256, %s16, [#allocation3], 32, 32, 2
    $region5: #{tpu_custom_call.1} parent=1 // pred_fallthru
      _
    // Predicated region
    $region6: #{tpu_custom_call.1} parent=1 // pred_check
      _
    $region7: #{tpu_custom_call.1} parent=1 // pred_check_branch
      %23 = sbr.rel (0) target = $region9
    $region8: #{tpu_custom_call.1} parent=1 // pred_region
      %s25 = ssub.s32 1152, 1152
      %26 = vsyncadd [#allocation6], %s25
      %s27 = sshll.u32 [#allocation5], 4
      %s28 = int_to_ptr.vmem [resolvable:$true] %s27
      %33 = dma.hbm_to_vmem [thread:$0]  %s1, 1152, %s28, [#allocation6], 128, 128, 8
    $region9: #{tpu_custom_call.1} parent=1 // pred_fallthru
      _
    // Predicated region
    $region10: #{tpu_custom_call.1} parent=1 // pred_check
      _
    $region11: #{tpu_custom_call.1} parent=1 // pred_check_branch
      %35 = sbr.rel (0) target = $region13
    $region12: #{tpu_custom_call.1} parent=1 // pred_region
      %36 = dma.done [#allocation3], 256
    $region13: #{tpu_custom_call.1} parent=1 // pred_fallthru
      _
    // Predicated region
    $region14: #{tpu_custom_call.1} parent=1 // pred_check
      _
    $region15: #{tpu_custom_call.1} parent=1 // pred_check_branch
      %38 = sbr.rel (0) target = $region17
    $region16: #{tpu_custom_call.1} parent=1 // pred_region
      %39 = dma.done [#allocation6], 1152
    $region17: #{tpu_custom_call.1} parent=1 // pred_fallthru
      _
    %v40 = vld [vmem:[#allocation5] sm:$0xff]
    %v41 = vld [vmem:[#allocation5 + $0x8] sm:$0xff]
    %v42 = vld [vmem:[#allocation5 + $0x10] sm:$0xff]
    %v43 = vld [vmem:[#allocation5 + $0x18] sm:$0xff]
    %v44 = vld [vmem:[#allocation5 + $0x40] sm:$0xff]
    %v45 = vld [vmem:[#allocation2] sm:$0x3]
    %vm46 = vcmask 261120
    %v48 = vsel %vm46, 0.0, 0
    %50 = vmatprep.subr.mxu0 0.0
    %51 = vmatpush1.msra.mxu0 %v40
    %52 = vmatprep.subr.mxu0 0.0
    %53 = vmatpush1.msra.mxu0 %v41
    %54 = vmatprep.subr.mxu0 0.0
    %55 = vmatpush1.msra.mxu0 %v42
    %56 = vmatprep.subr.mxu0 0.0
    %57 = vmatpush1.msra.mxu0 %v43
    %58 = vmatprep.subr.mxu0 0.0
    %59 = vmatpush1.msra.mxu0 0.0
    %60 = vmatprep.subr.mxu0 0.0
    %61 = vmatpush1.msra.mxu0 0.0
    %62 = vmatprep.subr.mxu0 0.0
    %63 = vmatpush1.msra.mxu0 0.0
    %64 = vmatprep.subr.mxu0 0.0
    %65 = vmatpush1.msra.mxu0 0.0
    %66 = vmatprep.subr.mxu0 0.0
    %67 = vmatpush1.msra.mxu0 0.0
    %68 = vmatprep.subr.mxu0 0.0
    %69 = vmatpush1.msra.mxu0 0.0
    %70 = vmatprep.subr.mxu0 0.0
    %71 = vmatpush1.msra.mxu0 0.0
    %72 = vmatprep.subr.mxu0 0.0
    %73 = vmatpush1.msra.mxu0 0.0
    %74 = vmatprep.subr.mxu0 0.0
    %75 = vmatpush1.msra.mxu0 0.0
    %76 = vmatprep.subr.mxu0 0.0
    %77 = vmatpush1.msra.mxu0 0.0
    %78 = vmatprep.subr.mxu0 0.0
    %79 = vmatpush1.msra.mxu0 0.0
    %80 = vmatprep.subr.mxu0 0.0
    %81 = vmatpush1.msra.mxu0 0.0
    %82 = vmatprep.subr.mxu0 0.0
    %83 = vmatpush1.msra.mxu0 0.0
    %84 = vmatprep.subr.mxu0 0.0
    %85 = vmatpush1.msra.mxu0 0.0
    %86 = vmatprep.subr.mxu0 0.0
    %87 = vmatpush1.msra.mxu0 0.0
    %88 = vmatprep.subr.mxu0 0.0
    %89 = vmatpush1.msra.mxu0 0.0
    %90 = vmatprep.subr.mxu0 0.0
    %91 = vmatpush1.msra.mxu0 0.0
    %92 = vmatprep.subr.mxu0 0.0
    %93 = vmatpush1.msra.mxu0 0.0
    %94 = vmatprep.subr.mxu0 0.0
    %95 = vmatpush1.msra.mxu0 0.0
    %96 = vmatprep.subr.mxu0 0.0
    %97 = vmatpush1.msra.mxu0 0.0
    %98 = vmatprep.subr.mxu0 0.0
    %99 = vmatpush1.msra.mxu0 0.0
    %100 = vmatprep.subr.mxu0 0.0
    %101 = vmatpush1.msra.mxu0 0.0
    %102 = vmatprep.subr.mxu0 0.0
    %103 = vmatpush1.msra.mxu0 0.0
    %104 = vmatprep.subr.mxu0 0.0
    %105 = vmatpush1.msra.mxu0 0.0
    %106 = vmatprep.subr.mxu0 0.0
    %107 = vmatpush1.msra.mxu0 0.0
    %108 = vmatprep.subr.mxu0 0.0
    %109 = vmatpush1.msra.mxu0 0.0
    %110 = vmatprep.subr.mxu0 0.0
    %111 = vmatpush1.msra.mxu0 0.0
    %112 = vmatprep.subr.mxu0 0.0
    %113 = vmatpush1.msra.mxu0 0.0
    %114 = vmatprep.mubr.f32.mxu0 0.0
    %115 = vmatmul.mubr.f32.gmra.mrb[0].mxu0 %v48
    %v116 = vpop.f32.mrb[0].mxu0
    %v117 = vadd.f32 0.0, %v116
    %v118 = vpop.f32.mrb[0].mxu0
    %119 = vdwg.mxu0
    %v120 = vadd.f32 %v45, %v117
    %v121 = vxor.u32 %v120, 2147483648
    %v122 = vmul.f32 %v121, 1.442695
    %v123 = vpow.pop %v122
    %v124 = vadd.f32 %v123, 1.0
    %v125 = vrcp.pop %v124
    %v126 = vmul.f32 1.0, %v125
    %v127 = vtanh.pop %v120
    %v128 = vmul.f32 %v126, 0.0
    %130 = vrot.lane.b32.xlu0 %v127, 64
    %v131 = vpop.permute.xlu0 %130
    %v133 = vmul.f32 %v126, %v131
    %135 = vrot.lane.b32.xlu0 %v133, 32
    %v136 = vpop.permute.xlu0 %135
    %v138 = vadd.f32 %v128, %v136
    %v139 = vtanh.pop %v138
    %141 = vrot.lane.b32.xlu0 %v139, 64
    %v142 = vpop.permute.xlu0 %141
    %v144 = vmul.f32 %v126, %v142
    %s145 = scalar_lea.vmem [#allocation2], 2
    %v146 = vld [vmem:[%s145] sm:$0x3]
    %148 = vrot.lane.b32.xlu0 %v144, 32
    %v149 = vpop.permute.xlu0 %148
    %v150 = vsel %vm46, %v149, 0
    %152 = vmatprep.subr.mxu0 0.0
    %153 = vmatpush1.msra.mxu0 %v40
    %154 = vmatprep.subr.mxu0 0.0
    %155 = vmatpush1.msra.mxu0 %v41
    %156 = vmatprep.subr.mxu0 0.0
    %157 = vmatpush1.msra.mxu0 %v42
    %158 = vmatprep.subr.mxu0 0.0
    %159 = vmatpush1.msra.mxu0 %v43
    %160 = vmatprep.subr.mxu0 0.0
    %161 = vmatpush1.msra.mxu0 0.0
    %162 = vmatprep.subr.mxu0 0.0
    %163 = vmatpush1.msra.mxu0 0.0
    %164 = vmatprep.subr.mxu0 0.0
    %165 = vmatpush1.msra.mxu0 0.0
    %166 = vmatprep.subr.mxu0 0.0
    %167 = vmatpush1.msra.mxu0 0.0
    %168 = vmatprep.subr.mxu0 0.0
    %169 = vmatpush1.msra.mxu0 0.0
    %170 = vmatprep.subr.mxu0 0.0
    %171 = vmatpush1.msra.mxu0 0.0
    %172 = vmatprep.subr.mxu0 0.0
    %173 = vmatpush1.msra.mxu0 0.0
    %174 = vmatprep.subr.mxu0 0.0
    %175 = vmatpush1.msra.mxu0 0.0
    %176 = vmatprep.subr.mxu0 0.0
    %177 = vmatpush1.msra.mxu0 0.0
    %178 = vmatprep.subr.mxu0 0.0
    %179 = vmatpush1.msra.mxu0 0.0
    %180 = vmatprep.subr.mxu0 0.0
    %181 = vmatpush1.msra.mxu0 0.0
    %182 = vmatprep.subr.mxu0 0.0
    %183 = vmatpush1.msra.mxu0 0.0
    %184 = vmatprep.subr.mxu0 0.0
    %185 = vmatpush1.msra.mxu0 0.0
    %186 = vmatprep.subr.mxu0 0.0
    %187 = vmatpush1.msra.mxu0 0.0
    %188 = vmatprep.subr.mxu0 0.0
    %189 = vmatpush1.msra.mxu0 0.0
    %190 = vmatprep.subr.mxu0 0.0
    %191 = vmatpush1.msra.mxu0 0.0
    %192 = vmatprep.subr.mxu0 0.0
    %193 = vmatpush1.msra.mxu0 0.0
    %194 = vmatprep.subr.mxu0 0.0
    %195 = vmatpush1.msra.mxu0 0.0
    %196 = vmatprep.subr.mxu0 0.0
    %197 = vmatpush1.msra.mxu0 0.0
    %198 = vmatprep.subr.mxu0 0.0
    %199 = vmatpush1.msra.mxu0 0.0
    %200 = vmatprep.subr.mxu0 0.0
    %201 = vmatpush1.msra.mxu0 0.0
    %202 = vmatprep.subr.mxu0 0.0
    %203 = vmatpush1.msra.mxu0 0.0
    %204 = vmatprep.subr.mxu0 0.0
    %205 = vmatpush1.msra.mxu0 0.0
    %206 = vmatprep.subr.mxu0 0.0
    %207 = vmatpush1.msra.mxu0 0.0
    %208 = vmatprep.subr.mxu0 0.0
    %209 = vmatpush1.msra.mxu0 0.0
    %210 = vmatprep.subr.mxu0 0.0
    %211 = vmatpush1.msra.mxu0 0.0
    %212 = vmatprep.subr.mxu0 0.0
    %213 = vmatpush1.msra.mxu0 0.0
    %214 = vmatprep.subr.mxu0 0.0
    %215 = vmatpush1.msra.mxu0 0.0
    %216 = vmatprep.mubr.f32.mxu0 0.0
    %217 = vmatmul.mubr.f32.gmra.mrb[0].mxu0 %v150
    %v218 = vpop.f32.mrb[0].mxu0
    %v219 = vadd.f32 0.0, %v218
    %v220 = vpop.f32.mrb[0].mxu0
    %221 = vdwg.mxu0
    %v222 = vadd.f32 %v146, %v219
    %v223 = vxor.u32 %v222, 2147483648
    %v224 = vmul.f32 %v223, 1.442695
    %v225 = vpow.pop %v224
    %v226 = vadd.f32 %v225, 1.0
    %v227 = vrcp.pop %v226
    %v228 = vmul.f32 1.0, %v227
    %v229 = vtanh.pop %v222
    %v230 = vmul.f32 %v228, %v138
    %232 = vrot.lane.b32.xlu0 %v229, 64
    %v233 = vpop.permute.xlu0 %232
    %v235 = vmul.f32 %v228, %v233
    %237 = vrot.lane.b32.xlu0 %v235, 32
    %v238 = vpop.permute.xlu0 %237
    %v240 = vadd.f32 %v230, %v238
    %v241 = vtanh.pop %v240
    %243 = vrot.lane.b32.xlu0 %v241, 64
    %v244 = vpop.permute.xlu0 %243
    %v246 = vmul.f32 %v228, %v244
    %s247 = scalar_lea.vmem [#allocation2], 4
    %v248 = vld [vmem:[%s247] sm:$0x3]
    %250 = vrot.lane.b32.xlu0 %v246, 32
    %v251 = vpop.permute.xlu0 %250
    %v252 = vsel %vm46, %v251, 0
    %254 = vmatprep.subr.mxu0 0.0
    %255 = vmatpush1.msra.mxu0 %v40
    %256 = vmatprep.subr.mxu0 0.0
    %257 = vmatpush1.msra.mxu0 %v41
    %258 = vmatprep.subr.mxu0 0.0
    %259 = vmatpush1.msra.mxu0 %v42
    %260 = vmatprep.subr.mxu0 0.0
    %261 = vmatpush1.msra.mxu0 %v43
    %262 = vmatprep.subr.mxu0 0.0
    %263 = vmatpush1.msra.mxu0 0.0
    %264 = vmatprep.subr.mxu0 0.0
    %265 = vmatpush1.msra.mxu0 0.0
    %266 = vmatprep.subr.mxu0 0.0
    %267 = vmatpush1.msra.mxu0 0.0
    %268 = vmatprep.subr.mxu0 0.0
    %269 = vmatpush1.msra.mxu0 0.0
    %270 = vmatprep.subr.mxu0 0.0
    %271 = vmatpush1.msra.mxu0 0.0
    %272 = vmatprep.subr.mxu0 0.0
    %273 = vmatpush1.msra.mxu0 0.0
    %274 = vmatprep.subr.mxu0 0.0
    %275 = vmatpush1.msra.mxu0 0.0
    %276 = vmatprep.subr.mxu0 0.0
    %277 = vmatpush1.msra.mxu0 0.0
    %278 = vmatprep.subr.mxu0 0.0
    %279 = vmatpush1.msra.mxu0 0.0
    %280 = vmatprep.subr.mxu0 0.0
    %281 = vmatpush1.msra.mxu0 0.0
    %282 = vmatprep.subr.mxu0 0.0
    %283 = vmatpush1.msra.mxu0 0.0
    %284 = vmatprep.subr.mxu0 0.0
    %285 = vmatpush1.msra.mxu0 0.0
    %286 = vmatprep.subr.mxu0 0.0
    %287 = vmatpush1.msra.mxu0 0.0
    %288 = vmatprep.subr.mxu0 0.0
    %289 = vmatpush1.msra.mxu0 0.0
    %290 = vmatprep.subr.mxu0 0.0
    %291 = vmatpush1.msra.mxu0 0.0
    %292 = vmatprep.subr.mxu0 0.0
    %293 = vmatpush1.msra.mxu0 0.0
    %294 = vmatprep.subr.mxu0 0.0
    %295 = vmatpush1.msra.mxu0 0.0
    %296 = vmatprep.subr.mxu0 0.0
    %297 = vmatpush1.msra.mxu0 0.0
    %298 = vmatprep.subr.mxu0 0.0
    %299 = vmatpush1.msra.mxu0 0.0
    %300 = vmatprep.subr.mxu0 0.0
    %301 = vmatpush1.msra.mxu0 0.0
    %302 = vmatprep.subr.mxu0 0.0
    %303 = vmatpush1.msra.mxu0 0.0
    %304 = vmatprep.subr.mxu0 0.0
    %305 = vmatpush1.msra.mxu0 0.0
    %306 = vmatprep.subr.mxu0 0.0
    %307 = vmatpush1.msra.mxu0 0.0
    %308 = vmatprep.subr.mxu0 0.0
    %309 = vmatpush1.msra.mxu0 0.0
    %310 = vmatprep.subr.mxu0 0.0
    %311 = vmatpush1.msra.mxu0 0.0
    %312 = vmatprep.subr.mxu0 0.0
    %313 = vmatpush1.msra.mxu0 0.0
    %314 = vmatprep.subr.mxu0 0.0
    %315 = vmatpush1.msra.mxu0 0.0
    %316 = vmatprep.subr.mxu0 0.0
    %317 = vmatpush1.msra.mxu0 0.0
    %318 = vmatprep.mubr.f32.mxu0 0.0
    %319 = vmatmul.mubr.f32.gmra.mrb[0].mxu0 %v252
    %v320 = vpop.f32.mrb[0].mxu0
    %v321 = vadd.f32 0.0, %v320
    %v322 = vpop.f32.mrb[0].mxu0
    %323 = vdwg.mxu0
    %v324 = vadd.f32 %v248, %v321
    %v325 = vxor.u32 %v324, 2147483648
    %v326 = vmul.f32 %v325, 1.442695
    %v327 = vpow.pop %v326
    %v328 = vadd.f32 %v327, 1.0
    %v329 = vrcp.pop %v328
    %v330 = vmul.f32 1.0, %v329
    %v331 = vtanh.pop %v324
    %v332 = vmul.f32 %v330, %v240
    %334 = vrot.lane.b32.xlu0 %v331, 64
    %v335 = vpop.permute.xlu0 %334
    %v337 = vmul.f32 %v330, %v335
    %339 = vrot.lane.b32.xlu0 %v337, 32
    %v340 = vpop.permute.xlu0 %339
    %v342 = vadd.f32 %v332, %v340
    %v343 = vtanh.pop %v342
    %345 = vrot.lane.b32.xlu0 %v343, 64
    %v346 = vpop.permute.xlu0 %345
    %v348 = vmul.f32 %v330, %v346
    %s349 = scalar_lea.vmem [#allocation2], 6
    %v350 = vld [vmem:[%s349] sm:$0x3]
    %352 = vrot.lane.b32.xlu0 %v348, 32
    %v353 = vpop.permute.xlu0 %352
    %v354 = vsel %vm46, %v353, 0
    %356 = vmatprep.subr.mxu0 0.0
    %357 = vmatpush1.msra.mxu0 %v40
    %358 = vmatprep.subr.mxu0 0.0
    %359 = vmatpush1.msra.mxu0 %v41
    %360 = vmatprep.subr.mxu0 0.0
    %361 = vmatpush1.msra.mxu0 %v42
    %362 = vmatprep.subr.mxu0 0.0
    %363 = vmatpush1.msra.mxu0 %v43
    %364 = vmatprep.subr.mxu0 0.0
    %365 = vmatpush1.msra.mxu0 0.0
    %366 = vmatprep.subr.mxu0 0.0
    %367 = vmatpush1.msra.mxu0 0.0
    %368 = vmatprep.subr.mxu0 0.0
    %369 = vmatpush1.msra.mxu0 0.0
    %370 = vmatprep.subr.mxu0 0.0
    %371 = vmatpush1.msra.mxu0 0.0
    %372 = vmatprep.subr.mxu0 0.0
    %373 = vmatpush1.msra.mxu0 0.0
    %374 = vmatprep.subr.mxu0 0.0
    %375 = vmatpush1.msra.mxu0 0.0
    %376 = vmatprep.subr.mxu0 0.0
    %377 = vmatpush1.msra.mxu0 0.0
    %378 = vmatprep.subr.mxu0 0.0
    %379 = vmatpush1.msra.mxu0 0.0
    %380 = vmatprep.subr.mxu0 0.0
    %381 = vmatpush1.msra.mxu0 0.0
    %382 = vmatprep.subr.mxu0 0.0
    %383 = vmatpush1.msra.mxu0 0.0
    %384 = vmatprep.subr.mxu0 0.0
    %385 = vmatpush1.msra.mxu0 0.0
    %386 = vmatprep.subr.mxu0 0.0
    %387 = vmatpush1.msra.mxu0 0.0
    %388 = vmatprep.subr.mxu0 0.0
    %389 = vmatpush1.msra.mxu0 0.0
    %390 = vmatprep.subr.mxu0 0.0
    %391 = vmatpush1.msra.mxu0 0.0
    %392 = vmatprep.subr.mxu0 0.0
    %393 = vmatpush1.msra.mxu0 0.0
    %394 = vmatprep.subr.mxu0 0.0
    %395 = vmatpush1.msra.mxu0 0.0
    %396 = vmatprep.subr.mxu0 0.0
    %397 = vmatpush1.msra.mxu0 0.0
    %398 = vmatprep.subr.mxu0 0.0
    %399 = vmatpush1.msra.mxu0 0.0
    %400 = vmatprep.subr.mxu0 0.0
    %401 = vmatpush1.msra.mxu0 0.0
    %402 = vmatprep.subr.mxu0 0.0
    %403 = vmatpush1.msra.mxu0 0.0
    %404 = vmatprep.subr.mxu0 0.0
    %405 = vmatpush1.msra.mxu0 0.0
    %406 = vmatprep.subr.mxu0 0.0
    %407 = vmatpush1.msra.mxu0 0.0
    %408 = vmatprep.subr.mxu0 0.0
    %409 = vmatpush1.msra.mxu0 0.0
    %410 = vmatprep.subr.mxu0 0.0
    %411 = vmatpush1.msra.mxu0 0.0
    %412 = vmatprep.subr.mxu0 0.0
    %413 = vmatpush1.msra.mxu0 0.0
    %414 = vmatprep.subr.mxu0 0.0
    %415 = vmatpush1.msra.mxu0 0.0
    %416 = vmatprep.subr.mxu0 0.0
    %417 = vmatpush1.msra.mxu0 0.0
    %418 = vmatprep.subr.mxu0 0.0
    %419 = vmatpush1.msra.mxu0 0.0
    %420 = vmatprep.mubr.f32.mxu0 0.0
    %421 = vmatmul.mubr.f32.gmra.mrb[0].mxu0 %v354
    %v422 = vpop.f32.mrb[0].mxu0
    %v423 = vadd.f32 0.0, %v422
    %v424 = vpop.f32.mrb[0].mxu0
    %425 = vdwg.mxu0
    %v426 = vadd.f32 %v350, %v423
    %v427 = vxor.u32 %v426, 2147483648
    %v428 = vmul.f32 %v427, 1.442695
    %v429 = vpow.pop %v428
    %v430 = vadd.f32 %v429, 1.0
    %v431 = vrcp.pop %v430
    %v432 = vmul.f32 1.0, %v431
    %v433 = vtanh.pop %v426
    %v434 = vmul.f32 %v432, %v342
    %436 = vrot.lane.b32.xlu0 %v433, 64
    %v437 = vpop.permute.xlu0 %436
    %v439 = vmul.f32 %v432, %v437
    %441 = vrot.lane.b32.xlu0 %v439, 32
    %v442 = vpop.permute.xlu0 %441
    %v444 = vadd.f32 %v434, %v442
    %v445 = vtanh.pop %v444
    %447 = vrot.lane.b32.xlu0 %v445, 64
    %v448 = vpop.permute.xlu0 %447
    %v450 = vmul.f32 %v432, %v448
    %s451 = scalar_lea.vmem [#allocation2], 8
    %v452 = vld [vmem:[%s451] sm:$0x3]
    %454 = vrot.lane.b32.xlu0 %v450, 32
    %v455 = vpop.permute.xlu0 %454
    %v456 = vsel %vm46, %v455, 0
    %458 = vmatprep.subr.mxu0 0.0
    %459 = vmatpush1.msra.mxu0 %v40
    %460 = vmatprep.subr.mxu0 0.0
    %461 = vmatpush1.msra.mxu0 %v41
    %462 = vmatprep.subr.mxu0 0.0
    %463 = vmatpush1.msra.mxu0 %v42
    %464 = vmatprep.subr.mxu0 0.0
    %465 = vmatpush1.msra.mxu0 %v43
    %466 = vmatprep.subr.mxu0 0.0
    %467 = vmatpush1.msra.mxu0 0.0
    %468 = vmatprep.subr.mxu0 0.0
    %469 = vmatpush1.msra.mxu0 0.0
    %470 = vmatprep.subr.mxu0 0.0
    %471 = vmatpush1.msra.mxu0 0.0
    %472 = vmatprep.subr.mxu0 0.0
    %473 = vmatpush1.msra.mxu0 0.0
    %474 = vmatprep.subr.mxu0 0.0
    %475 = vmatpush1.msra.mxu0 0.0
    %476 = vmatprep.subr.mxu0 0.0
    %477 = vmatpush1.msra.mxu0 0.0
    %478 = vmatprep.subr.mxu0 0.0
    %479 = vmatpush1.msra.mxu0 0.0
    %480 = vmatprep.subr.mxu0 0.0
    %481 = vmatpush1.msra.mxu0 0.0
    %482 = vmatprep.subr.mxu0 0.0
    %483 = vmatpush1.msra.mxu0 0.0
    %484 = vmatprep.subr.mxu0 0.0
    %485 = vmatpush1.msra.mxu0 0.0
    %486 = vmatprep.subr.mxu0 0.0
    %487 = vmatpush1.msra.mxu0 0.0
    %488 = vmatprep.subr.mxu0 0.0
    %489 = vmatpush1.msra.mxu0 0.0
    %490 = vmatprep.subr.mxu0 0.0
    %491 = vmatpush1.msra.mxu0 0.0
    %492 = vmatprep.subr.mxu0 0.0
    %493 = vmatpush1.msra.mxu0 0.0
    %494 = vmatprep.subr.mxu0 0.0
    %495 = vmatpush1.msra.mxu0 0.0
    %496 = vmatprep.subr.mxu0 0.0
    %497 = vmatpush1.msra.mxu0 0.0
    %498 = vmatprep.subr.mxu0 0.0
    %499 = vmatpush1.msra.mxu0 0.0
    %500 = vmatprep.subr.mxu0 0.0
    %501 = vmatpush1.msra.mxu0 0.0
    %502 = vmatprep.subr.mxu0 0.0
    %503 = vmatpush1.msra.mxu0 0.0
    %504 = vmatprep.subr.mxu0 0.0
    %505 = vmatpush1.msra.mxu0 0.0
    %506 = vmatprep.subr.mxu0 0.0
    %507 = vmatpush1.msra.mxu0 0.0
    %508 = vmatprep.subr.mxu0 0.0
    %509 = vmatpush1.msra.mxu0 0.0
    %510 = vmatprep.subr.mxu0 0.0
    %511 = vmatpush1.msra.mxu0 0.0
    %512 = vmatprep.subr.mxu0 0.0
    %513 = vmatpush1.msra.mxu0 0.0
    %514 = vmatprep.subr.mxu0 0.0
    %515 = vmatpush1.msra.mxu0 0.0
    %516 = vmatprep.subr.mxu0 0.0
    %517 = vmatpush1.msra.mxu0 0.0
    %518 = vmatprep.subr.mxu0 0.0
    %519 = vmatpush1.msra.mxu0 0.0
    %520 = vmatprep.subr.mxu0 0.0
    %521 = vmatpush1.msra.mxu0 0.0
    %522 = vmatprep.mubr.f32.mxu0 0.0
    %523 = vmatmul.mubr.f32.gmra.mrb[0].mxu0 %v456
    %v524 = vpop.f32.mrb[0].mxu0
    %v525 = vadd.f32 0.0, %v524
    %v526 = vpop.f32.mrb[0].mxu0
    %527 = vdwg.mxu0
    %v528 = vadd.f32 %v452, %v525
    %v529 = vxor.u32 %v528, 2147483648
    %v530 = vmul.f32 %v529, 1.442695
    %v531 = vpow.pop %v530
    %v532 = vadd.f32 %v531, 1.0
    %v533 = vrcp.pop %v532
    %v534 = vmul.f32 1.0, %v533
    %v535 = vtanh.pop %v528
    %v536 = vmul.f32 %v534, %v444
    %538 = vrot.lane.b32.xlu0 %v535, 64
    %v539 = vpop.permute.xlu0 %538
    %v541 = vmul.f32 %v534, %v539
    %543 = vrot.lane.b32.xlu0 %v541, 32
    %v544 = vpop.permute.xlu0 %543
    %v546 = vadd.f32 %v536, %v544
    %v547 = vtanh.pop %v546
    %549 = vrot.lane.b32.xlu0 %v547, 64
    %v550 = vpop.permute.xlu0 %549
    %v552 = vmul.f32 %v534, %v550
    %s553 = scalar_lea.vmem [#allocation2], 10
    %v554 = vld [vmem:[%s553] sm:$0x3]
    %556 = vrot.lane.b32.xlu0 %v552, 32
    %v557 = vpop.permute.xlu0 %556
    %v558 = vsel %vm46, %v557, 0
    %560 = vmatprep.subr.mxu0 0.0
    %561 = vmatpush1.msra.mxu0 %v40
    %562 = vmatprep.subr.mxu0 0.0
    %563 = vmatpush1.msra.mxu0 %v41
    %564 = vmatprep.subr.mxu0 0.0
    %565 = vmatpush1.msra.mxu0 %v42
    %566 = vmatprep.subr.mxu0 0.0
    %567 = vmatpush1.msra.mxu0 %v43
    %568 = vmatprep.subr.mxu0 0.0
    %569 = vmatpush1.msra.mxu0 0.0
    %570 = vmatprep.subr.mxu0 0.0
    %571 = vmatpush1.msra.mxu0 0.0
    %572 = vmatprep.subr.mxu0 0.0
    %573 = vmatpush1.msra.mxu0 0.0
    %574 = vmatprep.subr.mxu0 0.0
    %575 = vmatpush1.msra.mxu0 0.0
    %576 = vmatprep.subr.mxu0 0.0
    %577 = vmatpush1.msra.mxu0 0.0
    %578 = vmatprep.subr.mxu0 0.0
    %579 = vmatpush1.msra.mxu0 0.0
    %580 = vmatprep.subr.mxu0 0.0
    %581 = vmatpush1.msra.mxu0 0.0
    %582 = vmatprep.subr.mxu0 0.0
    %583 = vmatpush1.msra.mxu0 0.0
    %584 = vmatprep.subr.mxu0 0.0
    %585 = vmatpush1.msra.mxu0 0.0
    %586 = vmatprep.subr.mxu0 0.0
    %587 = vmatpush1.msra.mxu0 0.0
    %588 = vmatprep.subr.mxu0 0.0
    %589 = vmatpush1.msra.mxu0 0.0
    %590 = vmatprep.subr.mxu0 0.0
    %591 = vmatpush1.msra.mxu0 0.0
    %592 = vmatprep.subr.mxu0 0.0
    %593 = vmatpush1.msra.mxu0 0.0
    %594 = vmatprep.subr.mxu0 0.0
    %595 = vmatpush1.msra.mxu0 0.0
    %596 = vmatprep.subr.mxu0 0.0
    %597 = vmatpush1.msra.mxu0 0.0
    %598 = vmatprep.subr.mxu0 0.0
    %599 = vmatpush1.msra.mxu0 0.0
    %600 = vmatprep.subr.mxu0 0.0
    %601 = vmatpush1.msra.mxu0 0.0
    %602 = vmatprep.subr.mxu0 0.0
    %603 = vmatpush1.msra.mxu0 0.0
    %604 = vmatprep.subr.mxu0 0.0
    %605 = vmatpush1.msra.mxu0 0.0
    %606 = vmatprep.subr.mxu0 0.0
    %607 = vmatpush1.msra.mxu0 0.0
    %608 = vmatprep.subr.mxu0 0.0
    %609 = vmatpush1.msra.mxu0 0.0
    %610 = vmatprep.subr.mxu0 0.0
    %611 = vmatpush1.msra.mxu0 0.0
    %612 = vmatprep.subr.mxu0 0.0
    %613 = vmatpush1.msra.mxu0 0.0
    %614 = vmatprep.subr.mxu0 0.0
    %615 = vmatpush1.msra.mxu0 0.0
    %616 = vmatprep.subr.mxu0 0.0
    %617 = vmatpush1.msra.mxu0 0.0
    %618 = vmatprep.subr.mxu0 0.0
    %619 = vmatpush1.msra.mxu0 0.0
    %620 = vmatprep.subr.mxu0 0.0
    %621 = vmatpush1.msra.mxu0 0.0
    %622 = vmatprep.subr.mxu0 0.0
    %623 = vmatpush1.msra.mxu0 0.0
    %624 = vmatprep.mubr.f32.mxu0 0.0
    %625 = vmatmul.mubr.f32.gmra.mrb[0].mxu0 %v558
    %v626 = vpop.f32.mrb[0].mxu0
    %v627 = vadd.f32 0.0, %v626
    %v628 = vpop.f32.mrb[0].mxu0
    %629 = vdwg.mxu0
    %v630 = vadd.f32 %v554, %v627
    %v631 = vxor.u32 %v630, 2147483648
    %v632 = vmul.f32 %v631, 1.442695
    %v633 = vpow.pop %v632
    %v634 = vadd.f32 %v633, 1.0
    %v635 = vrcp.pop %v634
    %v636 = vmul.f32 1.0, %v635
    %v637 = vtanh.pop %v630
    %v638 = vmul.f32 %v636, %v546
    %640 = vrot.lane.b32.xlu0 %v637, 64
    %v641 = vpop.permute.xlu0 %640
    %v643 = vmul.f32 %v636, %v641
    %645 = vrot.lane.b32.xlu0 %v643, 32
    %v646 = vpop.permute.xlu0 %645
    %v648 = vadd.f32 %v638, %v646
    %v649 = vtanh.pop %v648
    %651 = vrot.lane.b32.xlu0 %v649, 64
    %v652 = vpop.permute.xlu0 %651
    %v654 = vmul.f32 %v636, %v652
    %s655 = scalar_lea.vmem [#allocation2], 12
    %v656 = vld [vmem:[%s655] sm:$0x3]
    %658 = vrot.lane.b32.xlu0 %v654, 32
    %v659 = vpop.permute.xlu0 %658
    %v660 = vsel %vm46, %v659, 0
    %662 = vmatprep.subr.mxu0 0.0
    %663 = vmatpush1.msra.mxu0 %v40
    %664 = vmatprep.subr.mxu0 0.0
    %665 = vmatpush1.msra.mxu0 %v41
    %666 = vmatprep.subr.mxu0 0.0
    %667 = vmatpush1.msra.mxu0 %v42
    %668 = vmatprep.subr.mxu0 0.0
    %669 = vmatpush1.msra.mxu0 %v43
    %670 = vmatprep.subr.mxu0 0.0
    %671 = vmatpush1.msra.mxu0 0.0
    %672 = vmatprep.subr.mxu0 0.0
    %673 = vmatpush1.msra.mxu0 0.0
    %674 = vmatprep.subr.mxu0 0.0
    %675 = vmatpush1.msra.mxu0 0.0
    %676 = vmatprep.subr.mxu0 0.0
    %677 = vmatpush1.msra.mxu0 0.0
    %678 = vmatprep.subr.mxu0 0.0
    %679 = vmatpush1.msra.mxu0 0.0
    %680 = vmatprep.subr.mxu0 0.0
    %681 = vmatpush1.msra.mxu0 0.0
    %682 = vmatprep.subr.mxu0 0.0
    %683 = vmatpush1.msra.mxu0 0.0
    %684 = vmatprep.subr.mxu0 0.0
    %685 = vmatpush1.msra.mxu0 0.0
    %686 = vmatprep.subr.mxu0 0.0
    %687 = vmatpush1.msra.mxu0 0.0
    %688 = vmatprep.subr.mxu0 0.0
    %689 = vmatpush1.msra.mxu0 0.0
    %690 = vmatprep.subr.mxu0 0.0
    %691 = vmatpush1.msra.mxu0 0.0
    %692 = vmatprep.subr.mxu0 0.0
    %693 = vmatpush1.msra.mxu0 0.0
    %694 = vmatprep.subr.mxu0 0.0
    %695 = vmatpush1.msra.mxu0 0.0
    %696 = vmatprep.subr.mxu0 0.0
    %697 = vmatpush1.msra.mxu0 0.0
    %698 = vmatprep.subr.mxu0 0.0
    %699 = vmatpush1.msra.mxu0 0.0
    %700 = vmatprep.subr.mxu0 0.0
    %701 = vmatpush1.msra.mxu0 0.0
    %702 = vmatprep.subr.mxu0 0.0
    %703 = vmatpush1.msra.mxu0 0.0
    %704 = vmatprep.subr.mxu0 0.0
    %705 = vmatpush1.msra.mxu0 0.0
    %706 = vmatprep.subr.mxu0 0.0
    %707 = vmatpush1.msra.mxu0 0.0
    %708 = vmatprep.subr.mxu0 0.0
    %709 = vmatpush1.msra.mxu0 0.0
    %710 = vmatprep.subr.mxu0 0.0
    %711 = vmatpush1.msra.mxu0 0.0
    %712 = vmatprep.subr.mxu0 0.0
    %713 = vmatpush1.msra.mxu0 0.0
    %714 = vmatprep.subr.mxu0 0.0
    %715 = vmatpush1.msra.mxu0 0.0
    %716 = vmatprep.subr.mxu0 0.0
    %717 = vmatpush1.msra.mxu0 0.0
    %718 = vmatprep.subr.mxu0 0.0
    %719 = vmatpush1.msra.mxu0 0.0
    %720 = vmatprep.subr.mxu0 0.0
    %721 = vmatpush1.msra.mxu0 0.0
    %722 = vmatprep.subr.mxu0 0.0
    %723 = vmatpush1.msra.mxu0 0.0
    %724 = vmatprep.subr.mxu0 0.0
    %725 = vmatpush1.msra.mxu0 0.0
    %726 = vmatprep.mubr.f32.mxu0 0.0
    %727 = vmatmul.mubr.f32.gmra.mrb[0].mxu0 %v660
    %v728 = vpop.f32.mrb[0].mxu0
    %v729 = vadd.f32 0.0, %v728
    %v730 = vpop.f32.mrb[0].mxu0
    %731 = vdwg.mxu0
    %v732 = vadd.f32 %v656, %v729
    %v733 = vxor.u32 %v732, 2147483648
    %v734 = vmul.f32 %v733, 1.442695
    %v735 = vpow.pop %v734
    %v736 = vadd.f32 %v735, 1.0
    %v737 = vrcp.pop %v736
    %v738 = vmul.f32 1.0, %v737
    %v739 = vtanh.pop %v732
    %v740 = vmul.f32 %v738, %v648
    %742 = vrot.lane.b32.xlu0 %v739, 64
    %v743 = vpop.permute.xlu0 %742
    %v745 = vmul.f32 %v738, %v743
    %747 = vrot.lane.b32.xlu0 %v745, 32
    %v748 = vpop.permute.xlu0 %747
    %v750 = vadd.f32 %v740, %v748
    %v751 = vtanh.pop %v750
    %753 = vrot.lane.b32.xlu0 %v751, 64
    %v754 = vpop.permute.xlu0 %753
    %v756 = vmul.f32 %v738, %v754
    %s757 = scalar_lea.vmem [#allocation2], 14
    %v758 = vld [vmem:[%s757] sm:$0x3]
    %760 = vrot.lane.b32.xlu0 %v756, 32
    %v761 = vpop.permute.xlu0 %760
    %v762 = vsel %vm46, %v761, 0
    %764 = vmatprep.subr.mxu0 0.0
    %765 = vmatpush1.msra.mxu0 %v40
    %766 = vmatprep.subr.mxu0 0.0
    %767 = vmatpush1.msra.mxu0 %v41
    %768 = vmatprep.subr.mxu0 0.0
    %769 = vmatpush1.msra.mxu0 %v42
    %770 = vmatprep.subr.mxu0 0.0
    %771 = vmatpush1.msra.mxu0 %v43
    %772 = vmatprep.subr.mxu0 0.0
    %773 = vmatpush1.msra.mxu0 0.0
    %774 = vmatprep.subr.mxu0 0.0
    %775 = vmatpush1.msra.mxu0 0.0
    %776 = vmatprep.subr.mxu0 0.0
    %777 = vmatpush1.msra.mxu0 0.0
    %778 = vmatprep.subr.mxu0 0.0
    %779 = vmatpush1.msra.mxu0 0.0
    %780 = vmatprep.subr.mxu0 0.0
    %781 = vmatpush1.msra.mxu0 0.0
    %782 = vmatprep.subr.mxu0 0.0
    %783 = vmatpush1.msra.mxu0 0.0
    %784 = vmatprep.subr.mxu0 0.0
    %785 = vmatpush1.msra.mxu0 0.0
    %786 = vmatprep.subr.mxu0 0.0
    %787 = vmatpush1.msra.mxu0 0.0
    %788 = vmatprep.subr.mxu0 0.0
    %789 = vmatpush1.msra.mxu0 0.0
    %790 = vmatprep.subr.mxu0 0.0
    %791 = vmatpush1.msra.mxu0 0.0
    %792 = vmatprep.subr.mxu0 0.0
    %793 = vmatpush1.msra.mxu0 0.0
    %794 = vmatprep.subr.mxu0 0.0
    %795 = vmatpush1.msra.mxu0 0.0
    %796 = vmatprep.subr.mxu0 0.0
    %797 = vmatpush1.msra.mxu0 0.0
    %798 = vmatprep.subr.mxu0 0.0
    %799 = vmatpush1.msra.mxu0 0.0
    %800 = vmatprep.subr.mxu0 0.0
    %801 = vmatpush1.msra.mxu0 0.0
    %802 = vmatprep.subr.mxu0 0.0
    %803 = vmatpush1.msra.mxu0 0.0
    %804 = vmatprep.subr.mxu0 0.0
    %805 = vmatpush1.msra.mxu0 0.0
    %806 = vmatprep.subr.mxu0 0.0
    %807 = vmatpush1.msra.mxu0 0.0
    %808 = vmatprep.subr.mxu0 0.0
    %809 = vmatpush1.msra.mxu0 0.0
    %810 = vmatprep.subr.mxu0 0.0
    %811 = vmatpush1.msra.mxu0 0.0
    %812 = vmatprep.subr.mxu0 0.0
    %813 = vmatpush1.msra.mxu0 0.0
    %814 = vmatprep.subr.mxu0 0.0
    %815 = vmatpush1.msra.mxu0 0.0
    %816 = vmatprep.subr.mxu0 0.0
    %817 = vmatpush1.msra.mxu0 0.0
    %818 = vmatprep.subr.mxu0 0.0
    %819 = vmatpush1.msra.mxu0 0.0
    %820 = vmatprep.subr.mxu0 0.0
    %821 = vmatpush1.msra.mxu0 0.0
    %822 = vmatprep.subr.mxu0 0.0
    %823 = vmatpush1.msra.mxu0 0.0
    %824 = vmatprep.subr.mxu0 0.0
    %825 = vmatpush1.msra.mxu0 0.0
    %826 = vmatprep.subr.mxu0 0.0
    %827 = vmatpush1.msra.mxu0 0.0
    %828 = vmatprep.mubr.f32.mxu0 0.0
    %829 = vmatmul.mubr.f32.gmra.mrb[0].mxu0 %v762
    %v830 = vpop.f32.mrb[0].mxu0
    %v831 = vadd.f32 0.0, %v830
    %v832 = vpop.f32.mrb[0].mxu0
    %833 = vdwg.mxu0
    %v834 = vadd.f32 %v758, %v831
    %v835 = vxor.u32 %v834, 2147483648
    %v836 = vmul.f32 %v835, 1.442695
    %v837 = vpow.pop %v836
    %v838 = vadd.f32 %v837, 1.0
    %v839 = vrcp.pop %v838
    %v840 = vmul.f32 1.0, %v839
    %v841 = vtanh.pop %v834
    %v842 = vmul.f32 %v840, %v750
    %844 = vrot.lane.b32.xlu0 %v841, 64
    %v845 = vpop.permute.xlu0 %844
    %v847 = vmul.f32 %v840, %v845
    %849 = vrot.lane.b32.xlu0 %v847, 32
    %v850 = vpop.permute.xlu0 %849
    %v852 = vadd.f32 %v842, %v850
    %v853 = vtanh.pop %v852
    %855 = vrot.lane.b32.xlu0 %v853, 64
    %v856 = vpop.permute.xlu0 %855
    %v858 = vmul.f32 %v840, %v856
    %v859 = vld [vmem:[#allocation5 + $0x20] sm:$0xff]
    %v860 = vld [vmem:[#allocation5 + $0x28] sm:$0xff]
    %v861 = vld [vmem:[#allocation5 + $0x30] sm:$0xff]
    %v862 = vld [vmem:[#allocation5 + $0x38] sm:$0xff]
    %864 = vrot.lane.b32.xlu0 %v858, 32
    %v865 = vpop.permute.xlu0 %864
    %v866 = vsel %vm46, %v865, 0
    %868 = vmatprep.subr.mxu0 0.0
    %869 = vmatpush1.msra.mxu0 %v859
    %870 = vmatprep.subr.mxu0 0.0
    %871 = vmatpush1.msra.mxu0 %v860
    %872 = vmatprep.subr.mxu0 0.0
    %873 = vmatpush1.msra.mxu0 %v861
    %874 = vmatprep.subr.mxu0 0.0
    %875 = vmatpush1.msra.mxu0 %v862
    %876 = vmatprep.subr.mxu0 0.0
    %877 = vmatpush1.msra.mxu0 0.0
    %878 = vmatprep.subr.mxu0 0.0
    %879 = vmatpush1.msra.mxu0 0.0
    %880 = vmatprep.subr.mxu0 0.0
    %881 = vmatpush1.msra.mxu0 0.0
    %882 = vmatprep.subr.mxu0 0.0
    %883 = vmatpush1.msra.mxu0 0.0
    %884 = vmatprep.subr.mxu0 0.0
    %885 = vmatpush1.msra.mxu0 0.0
    %886 = vmatprep.subr.mxu0 0.0
    %887 = vmatpush1.msra.mxu0 0.0
    %888 = vmatprep.subr.mxu0 0.0
    %889 = vmatpush1.msra.mxu0 0.0
    %890 = vmatprep.subr.mxu0 0.0
    %891 = vmatpush1.msra.mxu0 0.0
    %892 = vmatprep.subr.mxu0 0.0
    %893 = vmatpush1.msra.mxu0 0.0
    %894 = vmatprep.subr.mxu0 0.0
    %895 = vmatpush1.msra.mxu0 0.0
    %896 = vmatprep.subr.mxu0 0.0
    %897 = vmatpush1.msra.mxu0 0.0
    %898 = vmatprep.subr.mxu0 0.0
    %899 = vmatpush1.msra.mxu0 0.0
    %900 = vmatprep.subr.mxu0 0.0
    %901 = vmatpush1.msra.mxu0 0.0
    %902 = vmatprep.subr.mxu0 0.0
    %903 = vmatpush1.msra.mxu0 0.0
    %904 = vmatprep.subr.mxu0 0.0
    %905 = vmatpush1.msra.mxu0 0.0
    %906 = vmatprep.subr.mxu0 0.0
    %907 = vmatpush1.msra.mxu0 0.0
    %908 = vmatprep.subr.mxu0 0.0
    %909 = vmatpush1.msra.mxu0 0.0
    %910 = vmatprep.subr.mxu0 0.0
    %911 = vmatpush1.msra.mxu0 0.0
    %912 = vmatprep.subr.mxu0 0.0
    %913 = vmatpush1.msra.mxu0 0.0
    %914 = vmatprep.subr.mxu0 0.0
    %915 = vmatpush1.msra.mxu0 0.0
    %916 = vmatprep.subr.mxu0 0.0
    %917 = vmatpush1.msra.mxu0 0.0
    %918 = vmatprep.subr.mxu0 0.0
    %919 = vmatpush1.msra.mxu0 0.0
    %920 = vmatprep.subr.mxu0 0.0
    %921 = vmatpush1.msra.mxu0 0.0
    %922 = vmatprep.subr.mxu0 0.0
    %923 = vmatpush1.msra.mxu0 0.0
    %924 = vmatprep.subr.mxu0 0.0
    %925 = vmatpush1.msra.mxu0 0.0
    %926 = vmatprep.subr.mxu0 0.0
    %927 = vmatpush1.msra.mxu0 0.0
    %928 = vmatprep.subr.mxu0 0.0
    %929 = vmatpush1.msra.mxu0 0.0
    %930 = vmatprep.subr.mxu0 0.0
    %931 = vmatpush1.msra.mxu0 0.0
    %932 = vmatprep.mubr.f32.mxu0 0.0
    %933 = vmatmul.mubr.f32.gmra.mrb[0].mxu0 %v866
    %v934 = vpop.f32.mrb[0].mxu0
    %v935 = vadd.f32 0.0, %v934
    %v936 = vpop.f32.mrb[0].mxu0
    %937 = vdwg.mxu0
    %v938 = vlaneseq
    %v939 = vshrl.u32 %v938, 7
    %v940 = vsub.s32 0, %v939
    %v941 = vrot.slane %v44, %v940
    %v942 = vadd.f32 %v941, %v935
    %v943 = vxor.u32 %v942, 2147483648
    %v944 = vmul.f32 %v943, 1.442695
    %v945 = vpow.pop %v944
    %v946 = vadd.f32 %v945, 1.0
    %v947 = vrcp.pop %v946
    %v948 = vmul.f32 1.0, %v947
    %v949 = vtanh.pop %v942
    %v950 = vmul.f32 %v948, %v852
    %952 = vrot.lane.b32.xlu0 %v949, 64
    %v953 = vpop.permute.xlu0 %952
    %v955 = vmul.f32 %v948, %v953
    %957 = vrot.lane.b32.xlu0 %v955, 32
    %v958 = vpop.permute.xlu0 %957
    %v960 = vadd.f32 %v950, %v958
    %v961 = vtanh.pop %v960
    %963 = vrot.lane.b32.xlu0 %v961, 64
    %v964 = vpop.permute.xlu0 %963
    %v966 = vmul.f32 %v948, %v964
    %968 = vrot.lane.b32.xlu0 %v966, 32
    %v969 = vpop.permute.xlu0 %968
    %v970 = vsel %vm46, %v969, 0
    %972 = vmatprep.subr.mxu0 0.0
    %973 = vmatpush1.msra.mxu0 %v859
    %974 = vmatprep.subr.mxu0 0.0
    %975 = vmatpush1.msra.mxu0 %v860
    %976 = vmatprep.subr.mxu0 0.0
    %977 = vmatpush1.msra.mxu0 %v861
    %978 = vmatprep.subr.mxu0 0.0
    %979 = vmatpush1.msra.mxu0 %v862
    %980 = vmatprep.subr.mxu0 0.0
    %981 = vmatpush1.msra.mxu0 0.0
    %982 = vmatprep.subr.mxu0 0.0
    %983 = vmatpush1.msra.mxu0 0.0
    %984 = vmatprep.subr.mxu0 0.0
    %985 = vmatpush1.msra.mxu0 0.0
    %986 = vmatprep.subr.mxu0 0.0
    %987 = vmatpush1.msra.mxu0 0.0
    %988 = vmatprep.subr.mxu0 0.0
    %989 = vmatpush1.msra.mxu0 0.0
    %990 = vmatprep.subr.mxu0 0.0
    %991 = vmatpush1.msra.mxu0 0.0
    %992 = vmatprep.subr.mxu0 0.0
    %993 = vmatpush1.msra.mxu0 0.0
    %994 = vmatprep.subr.mxu0 0.0
    %995 = vmatpush1.msra.mxu0 0.0
    %996 = vmatprep.subr.mxu0 0.0
    %997 = vmatpush1.msra.mxu0 0.0
    %998 = vmatprep.subr.mxu0 0.0
    %999 = vmatpush1.msra.mxu0 0.0
    %1000 = vmatprep.subr.mxu0 0.0
    %1001 = vmatpush1.msra.mxu0 0.0
    %1002 = vmatprep.subr.mxu0 0.0
    %1003 = vmatpush1.msra.mxu0 0.0
    %1004 = vmatprep.subr.mxu0 0.0
    %1005 = vmatpush1.msra.mxu0 0.0
    %1006 = vmatprep.subr.mxu0 0.0
    %1007 = vmatpush1.msra.mxu0 0.0
    %1008 = vmatprep.subr.mxu0 0.0
    %1009 = vmatpush1.msra.mxu0 0.0
    %1010 = vmatprep.subr.mxu0 0.0
    %1011 = vmatpush1.msra.mxu0 0.0
    %1012 = vmatprep.subr.mxu0 0.0
    %1013 = vmatpush1.msra.mxu0 0.0
    %1014 = vmatprep.subr.mxu0 0.0
    %1015 = vmatpush1.msra.mxu0 0.0
    %1016 = vmatprep.subr.mxu0 0.0
    %1017 = vmatpush1.msra.mxu0 0.0
    %1018 = vmatprep.subr.mxu0 0.0
    %1019 = vmatpush1.msra.mxu0 0.0
    %1020 = vmatprep.subr.mxu0 0.0
    %1021 = vmatpush1.msra.mxu0 0.0
    %1022 = vmatprep.subr.mxu0 0.0
    %1023 = vmatpush1.msra.mxu0 0.0
    %1024 = vmatprep.subr.mxu0 0.0
    %1025 = vmatpush1.msra.mxu0 0.0
    %1026 = vmatprep.subr.mxu0 0.0
    %1027 = vmatpush1.msra.mxu0 0.0
    %1028 = vmatprep.subr.mxu0 0.0
    %1029 = vmatpush1.msra.mxu0 0.0
    %1030 = vmatprep.subr.mxu0 0.0
    %1031 = vmatpush1.msra.mxu0 0.0
    %1032 = vmatprep.subr.mxu0 0.0
    %1033 = vmatpush1.msra.mxu0 0.0
    %1034 = vmatprep.subr.mxu0 0.0
    %1035 = vmatpush1.msra.mxu0 0.0
    %1036 = vmatprep.mubr.f32.mxu0 0.0
    %1037 = vmatmul.mubr.f32.gmra.mrb[0].mxu0 %v970
    %v1038 = vpop.f32.mrb[0].mxu0
    %v1039 = vadd.f32 0.0, %v1038
    %v1040 = vpop.f32.mrb[0].mxu0
    %1041 = vdwg.mxu0
    %v1042 = vadd.f32 %v941, %v1039
    %v1043 = vxor.u32 %v1042, 2147483648
    %v1044 = vmul.f32 %v1043, 1.442695
    %v1045 = vpow.pop %v1044
    %v1046 = vadd.f32 %v1045, 1.0
    %v1047 = vrcp.pop %v1046
    %v1048 = vmul.f32 1.0, %v1047
    %v1049 = vtanh.pop %v1042
    %v1050 = vmul.f32 %v1048, %v960
    %1052 = vrot.lane.b32.xlu0 %v1049, 64
    %v1053 = vpop.permute.xlu0 %1052
    %v1055 = vmul.f32 %v1048, %v1053
    %1057 = vrot.lane.b32.xlu0 %v1055, 32
    %v1058 = vpop.permute.xlu0 %1057
    %v1060 = vadd.f32 %v1050, %v1058
    %v1061 = vtanh.pop %v1060
    %1063 = vrot.lane.b32.xlu0 %v1061, 64
    %v1064 = vpop.permute.xlu0 %1063
    %v1066 = vmul.f32 %v1048, %v1064
    %1068 = vrot.lane.b32.xlu0 %v1066, 32
    %v1069 = vpop.permute.xlu0 %1068
    %v1070 = vsel %vm46, %v1069, 0
    %1072 = vmatprep.subr.mxu0 0.0
    %1073 = vmatpush1.msra.mxu0 %v859
    %1074 = vmatprep.subr.mxu0 0.0
    %1075 = vmatpush1.msra.mxu0 %v860
    %1076 = vmatprep.subr.mxu0 0.0
    %1077 = vmatpush1.msra.mxu0 %v861
    %1078 = vmatprep.subr.mxu0 0.0
    %1079 = vmatpush1.msra.mxu0 %v862
    %1080 = vmatprep.subr.mxu0 0.0
    %1081 = vmatpush1.msra.mxu0 0.0
    %1082 = vmatprep.subr.mxu0 0.0
    %1083 = vmatpush1.msra.mxu0 0.0
    %1084 = vmatprep.subr.mxu0 0.0
    %1085 = vmatpush1.msra.mxu0 0.0
    %1086 = vmatprep.subr.mxu0 0.0
    %1087 = vmatpush1.msra.mxu0 0.0
    %1088 = vmatprep.subr.mxu0 0.0
    %1089 = vmatpush1.msra.mxu0 0.0
    %1090 = vmatprep.subr.mxu0 0.0
    %1091 = vmatpush1.msra.mxu0 0.0
    %1092 = vmatprep.subr.mxu0 0.0
    %1093 = vmatpush1.msra.mxu0 0.0
    %1094 = vmatprep.subr.mxu0 0.0
    %1095 = vmatpush1.msra.mxu0 0.0
    %1096 = vmatprep.subr.mxu0 0.0
    %1097 = vmatpush1.msra.mxu0 0.0
    %1098 = vmatprep.subr.mxu0 0.0
    %1099 = vmatpush1.msra.mxu0 0.0
    %1100 = vmatprep.subr.mxu0 0.0
    %1101 = vmatpush1.msra.mxu0 0.0
    %1102 = vmatprep.subr.mxu0 0.0
    %1103 = vmatpush1.msra.mxu0 0.0
    %1104 = vmatprep.subr.mxu0 0.0
    %1105 = vmatpush1.msra.mxu0 0.0
    %1106 = vmatprep.subr.mxu0 0.0
    %1107 = vmatpush1.msra.mxu0 0.0
    %1108 = vmatprep.subr.mxu0 0.0
    %1109 = vmatpush1.msra.mxu0 0.0
    %1110 = vmatprep.subr.mxu0 0.0
    %1111 = vmatpush1.msra.mxu0 0.0
    %1112 = vmatprep.subr.mxu0 0.0
    %1113 = vmatpush1.msra.mxu0 0.0
    %1114 = vmatprep.subr.mxu0 0.0
    %1115 = vmatpush1.msra.mxu0 0.0
    %1116 = vmatprep.subr.mxu0 0.0
    %1117 = vmatpush1.msra.mxu0 0.0
    %1118 = vmatprep.subr.mxu0 0.0
    %1119 = vmatpush1.msra.mxu0 0.0
    %1120 = vmatprep.subr.mxu0 0.0
    %1121 = vmatpush1.msra.mxu0 0.0
    %1122 = vmatprep.subr.mxu0 0.0
    %1123 = vmatpush1.msra.mxu0 0.0
    %1124 = vmatprep.subr.mxu0 0.0
    %1125 = vmatpush1.msra.mxu0 0.0
    %1126 = vmatprep.subr.mxu0 0.0
    %1127 = vmatpush1.msra.mxu0 0.0
    %1128 = vmatprep.subr.mxu0 0.0
    %1129 = vmatpush1.msra.mxu0 0.0
    %1130 = vmatprep.subr.mxu0 0.0
    %1131 = vmatpush1.msra.mxu0 0.0
    %1132 = vmatprep.subr.mxu0 0.0
    %1133 = vmatpush1.msra.mxu0 0.0
    %1134 = vmatprep.subr.mxu0 0.0
    %1135 = vmatpush1.msra.mxu0 0.0
    %1136 = vmatprep.mubr.f32.mxu0 0.0
    %1137 = vmatmul.mubr.f32.gmra.mrb[0].mxu0 %v1070
    %v1138 = vpop.f32.mrb[0].mxu0
    %v1139 = vadd.f32 0.0, %v1138
    %v1140 = vpop.f32.mrb[0].mxu0
    %1141 = vdwg.mxu0
    %v1142 = vadd.f32 %v941, %v1139
    %v1143 = vxor.u32 %v1142, 2147483648
    %v1144 = vmul.f32 %v1143, 1.442695
    %v1145 = vpow.pop %v1144
    %v1146 = vadd.f32 %v1145, 1.0
    %v1147 = vrcp.pop %v1146
    %v1148 = vmul.f32 1.0, %v1147
    %v1149 = vtanh.pop %v1142
    %v1150 = vmul.f32 %v1148, %v1060
    %1152 = vrot.lane.b32.xlu0 %v1149, 64
    %v1153 = vpop.permute.xlu0 %1152
    %v1155 = vmul.f32 %v1148, %v1153
    %1157 = vrot.lane.b32.xlu0 %v1155, 32
    %v1158 = vpop.permute.xlu0 %1157
    %v1160 = vadd.f32 %v1150, %v1158
    %v1161 = vtanh.pop %v1160
    %1163 = vrot.lane.b32.xlu0 %v1161, 64
    %v1164 = vpop.permute.xlu0 %1163
    %v1166 = vmul.f32 %v1148, %v1164
    %v1168 = vunpack.c.l.s4 1966171168
    %v1169 = vunpack.c.0.s8 %v1168
    %v1170 = vlaneseq
    %v1171 = vshrl.u32 %v1170, 7
    %v1172 = vsub.s32 %v1169, %v1171
    %v1173 = vrot.slane %v144, %v1172
    %v1174 = vcombine.high %v1173, %v1173
    %v1176 = vunpack.c.l.s4 1966171168
    %v1177 = vunpack.c.0.s8 %v1176
    %v1178 = vlaneseq
    %v1179 = vshrl.u32 %v1178, 7
    %v1180 = vsub.s32 %v1177, %v1179
    %v1181 = vrot.slane %v1173, %v1180
    %v1183 = vunpack.c.l.s4 1966171168
    %v1184 = vunpack.c.0.s8 %v1183
    %v1185 = vlaneseq
    %v1186 = vshrl.u32 %v1185, 7
    %v1187 = vsub.s32 %v1184, %v1186
    %v1188 = vrot.slane %v1174, %v1187
    %v1192 = vunpack.c.l.s4 1966171168
    %v1193 = vunpack.c.0.s8 %v1192
    %v1194 = vlaneseq
    %v1195 = vshrl.u32 %v1194, 7
    %v1196 = vsub.s32 %v1193, %v1195
    %v1197 = vrot.slane %v246, %v1196
    %v1198 = vcombine.high %v1197, %v1197
    %v1200 = vunpack.c.l.s4 1966171168
    %v1201 = vunpack.c.0.s8 %v1200
    %v1202 = vlaneseq
    %v1203 = vshrl.u32 %v1202, 7
    %v1204 = vsub.s32 %v1201, %v1203
    %v1205 = vrot.slane %v1197, %v1204
    %v1207 = vunpack.c.l.s4 1966171168
    %v1208 = vunpack.c.0.s8 %v1207
    %v1209 = vlaneseq
    %v1210 = vshrl.u32 %v1209, 7
    %v1211 = vsub.s32 %v1208, %v1210
    %v1212 = vrot.slane %v1198, %v1211
    %v1214 = vunpack.c.l.s4 1966171168
    %v1215 = vunpack.c.0.s8 %v1214
    %v1216 = vlaneseq
    %v1217 = vshrl.u32 %v1216, 7
    %v1218 = vsub.s32 %v1215, %v1217
    %v1219 = vrot.slane %v348, %v1218
    %v1220 = vcombine.high %v1219, %v1219
    %v1222 = vunpack.c.l.s4 1966171168
    %v1223 = vunpack.c.0.s8 %v1222
    %v1224 = vlaneseq
    %v1225 = vshrl.u32 %v1224, 7
    %v1226 = vsub.s32 %v1223, %v1225
    %v1227 = vrot.slane %v1219, %v1226
    %v1229 = vunpack.c.l.s4 1966171168
    %v1230 = vunpack.c.0.s8 %v1229
    %v1231 = vlaneseq
    %v1232 = vshrl.u32 %v1231, 7
    %v1233 = vsub.s32 %v1230, %v1232
    %v1234 = vrot.slane %v1220, %v1233
    %v1236 = vunpack.c.l.s4 1966171168
    %v1237 = vunpack.c.0.s8 %v1236
    %v1238 = vlaneseq
    %v1239 = vshrl.u32 %v1238, 7
    %v1240 = vsub.s32 %v1237, %v1239
    %v1241 = vrot.slane %v450, %v1240
    %v1242 = vcombine.high %v1241, %v1241
    %v1244 = vunpack.c.l.s4 1966171168
    %v1245 = vunpack.c.0.s8 %v1244
    %v1246 = vlaneseq
    %v1247 = vshrl.u32 %v1246, 7
    %v1248 = vsub.s32 %v1245, %v1247
    %v1249 = vrot.slane %v1241, %v1248
    %v1251 = vunpack.c.l.s4 1966171168
    %v1252 = vunpack.c.0.s8 %v1251
    %v1253 = vlaneseq
    %v1254 = vshrl.u32 %v1253, 7
    %v1255 = vsub.s32 %v1252, %v1254
    %v1256 = vrot.slane %v1242, %v1255
    %v1258 = vunpack.c.l.s4 1966171168
    %v1259 = vunpack.c.0.s8 %v1258
    %v1260 = vlaneseq
    %v1261 = vshrl.u32 %v1260, 7
    %v1262 = vsub.s32 %v1259, %v1261
    %v1263 = vrot.slane %v552, %v1262
    %v1264 = vcombine.high %v1263, %v1263
    %v1266 = vunpack.c.l.s4 1966171168
    %v1267 = vunpack.c.0.s8 %v1266
    %v1268 = vlaneseq
    %v1269 = vshrl.u32 %v1268, 7
    %v1270 = vsub.s32 %v1267, %v1269
    %v1271 = vrot.slane %v1263, %v1270
    %v1273 = vunpack.c.l.s4 1966171168
    %v1274 = vunpack.c.0.s8 %v1273
    %v1275 = vlaneseq
    %v1276 = vshrl.u32 %v1275, 7
    %v1277 = vsub.s32 %v1274, %v1276
    %v1278 = vrot.slane %v1264, %v1277
    %v1280 = vunpack.c.l.s4 1966171168
    %v1281 = vunpack.c.0.s8 %v1280
    %v1282 = vlaneseq
    %v1283 = vshrl.u32 %v1282, 7
    %v1284 = vsub.s32 %v1281, %v1283
    %v1285 = vrot.slane %v654, %v1284
    %v1286 = vcombine.high %v1285, %v1285
    %v1288 = vunpack.c.l.s4 1966171168
    %v1289 = vunpack.c.0.s8 %v1288
    %v1290 = vlaneseq
    %v1291 = vshrl.u32 %v1290, 7
    %v1292 = vsub.s32 %v1289, %v1291
    %v1293 = vrot.slane %v1285, %v1292
    %v1295 = vunpack.c.l.s4 1966171168
    %v1296 = vunpack.c.0.s8 %v1295
    %v1297 = vlaneseq
    %v1298 = vshrl.u32 %v1297, 7
    %v1299 = vsub.s32 %v1296, %v1298
    %v1300 = vrot.slane %v1286, %v1299
    %v1302 = vunpack.c.l.s4 1966171168
    %v1303 = vunpack.c.0.s8 %v1302
    %v1304 = vlaneseq
    %v1305 = vshrl.u32 %v1304, 7
    %v1306 = vsub.s32 %v1303, %v1305
    %v1307 = vrot.slane %v756, %v1306
    %v1308 = vcombine.high %v1307, %v1307
    %v1310 = vunpack.c.l.s4 1966171168
    %v1311 = vunpack.c.0.s8 %v1310
    %v1312 = vlaneseq
    %v1313 = vshrl.u32 %v1312, 7
    %v1314 = vsub.s32 %v1311, %v1313
    %v1315 = vrot.slane %v1307, %v1314
    %v1317 = vunpack.c.l.s4 1966171168
    %v1318 = vunpack.c.0.s8 %v1317
    %v1319 = vlaneseq
    %v1320 = vshrl.u32 %v1319, 7
    %v1321 = vsub.s32 %v1318, %v1320
    %v1322 = vrot.slane %v1308, %v1321
    %v1324 = vunpack.c.l.s4 1966171168
    %v1325 = vunpack.c.0.s8 %v1324
    %v1326 = vlaneseq
    %v1327 = vshrl.u32 %v1326, 7
    %v1328 = vsub.s32 %v1325, %v1327
    %v1329 = vrot.slane %v858, %v1328
    %v1330 = vcombine.high %v1329, %v1329
    %v1332 = vunpack.c.l.s4 1966171168
    %v1333 = vunpack.c.0.s8 %v1332
    %v1334 = vlaneseq
    %v1335 = vshrl.u32 %v1334, 7
    %v1336 = vsub.s32 %v1333, %v1335
    %v1337 = vrot.slane %v1329, %v1336
    %v1339 = vunpack.c.l.s4 1966171168
    %v1340 = vunpack.c.0.s8 %v1339
    %v1341 = vlaneseq
    %v1342 = vshrl.u32 %v1341, 7
    %v1343 = vsub.s32 %v1340, %v1342
    %v1344 = vrot.slane %v1330, %v1343
    %v1346 = vunpack.c.l.s4 1966171168
    %v1347 = vunpack.c.0.s8 %v1346
    %v1348 = vlaneseq
    %v1349 = vshrl.u32 %v1348, 7
    %v1350 = vsub.s32 %v1347, %v1349
    %v1351 = vrot.slane %v966, %v1350
    %v1352 = vcombine.high %v1351, %v1351
    %v1354 = vunpack.c.l.s4 1966171168
    %v1355 = vunpack.c.0.s8 %v1354
    %v1356 = vlaneseq
    %v1357 = vshrl.u32 %v1356, 7
    %v1358 = vsub.s32 %v1355, %v1357
    %v1359 = vrot.slane %v1351, %v1358
    %v1361 = vunpack.c.l.s4 1966171168
    %v1362 = vunpack.c.0.s8 %v1361
    %v1363 = vlaneseq
    %v1364 = vshrl.u32 %v1363, 7
    %v1365 = vsub.s32 %v1362, %v1364
    %v1366 = vrot.slane %v1352, %v1365
    %v1370 = vunpack.c.l.s4 1966171168
    %v1371 = vunpack.c.0.s8 %v1370
    %v1372 = vlaneseq
    %v1373 = vshrl.u32 %v1372, 7
    %v1374 = vsub.s32 %v1371, %v1373
    %v1375 = vrot.slane %v1066, %v1374
    %v1376 = vcombine.high %v1375, %v1375
    %v1378 = vunpack.c.l.s4 1966171168
    %v1379 = vunpack.c.0.s8 %v1378
    %v1380 = vlaneseq
    %v1381 = vshrl.u32 %v1380, 7
    %v1382 = vsub.s32 %v1379, %v1381
    %v1383 = vrot.slane %v1375, %v1382
    %v1385 = vunpack.c.l.s4 1966171168
    %v1386 = vunpack.c.0.s8 %v1385
    %v1387 = vlaneseq
    %v1388 = vshrl.u32 %v1387, 7
    %v1389 = vsub.s32 %v1386, %v1388
    %v1390 = vrot.slane %v1376, %v1389
    %v1393 = vunpack.c.l.s4 1966171168
    %v1394 = vunpack.c.0.s8 %v1393
    %v1395 = vlaneseq
    %v1396 = vshrl.u32 %v1395, 7
    %v1397 = vsub.s32 %v1394, %v1396
    %v1398 = vrot.slane %v1166, %v1397
    %v1399 = vcombine.high %v1398, %v1398
    %v1401 = vunpack.c.l.s4 1966171168
    %v1402 = vunpack.c.0.s8 %v1401
    %v1403 = vlaneseq
    %v1404 = vshrl.u32 %v1403, 7
    %v1405 = vsub.s32 %v1402, %v1404
    %v1406 = vrot.slane %v1398, %v1405
    %v1408 = vunpack.c.l.s4 1966171168
    %v1409 = vunpack.c.0.s8 %v1408
    %v1410 = vlaneseq
    %v1411 = vshrl.u32 %v1410, 7
    %v1412 = vsub.s32 %v1409, %v1411
    %v1413 = vrot.slane %v1399, %v1412
    %v1414 = vlaneseq
    %v1415 = vshrl.u32 %v1414, 7
    %v1416 = vsub.s32 0, %v1415
    %v1417 = vrot.slane %v1205, %v1416
    %v1418 = vlaneseq
    %v1419 = vshrl.u32 %v1418, 7
    %v1420 = vsub.s32 0, %v1419
    %v1421 = vrot.slane %v1212, %v1420
    %v1424 = vlaneseq
    %v1425 = vshrl.u32 %v1424, 7
    %v1426 = vsub.s32 0, %v1425
    %v1427 = vrot.slane %v1227, %v1426
    %v1428 = vlaneseq
    %v1429 = vshrl.u32 %v1428, 7
    %v1430 = vsub.s32 0, %v1429
    %v1431 = vrot.slane %v1234, %v1430
    %v1434 = vlaneseq
    %v1435 = vshrl.u32 %v1434, 7
    %v1436 = vsub.s32 0, %v1435
    %v1437 = vrot.slane %v1249, %v1436
    %v1438 = vlaneseq
    %v1439 = vshrl.u32 %v1438, 7
    %v1440 = vsub.s32 0, %v1439
    %v1441 = vrot.slane %v1256, %v1440
    %v1444 = vlaneseq
    %v1445 = vshrl.u32 %v1444, 7
    %v1446 = vsub.s32 0, %v1445
    %v1447 = vrot.slane %v1271, %v1446
    %v1448 = vlaneseq
    %v1449 = vshrl.u32 %v1448, 7
    %v1450 = vsub.s32 0, %v1449
    %v1451 = vrot.slane %v1278, %v1450
    %v1454 = vlaneseq
    %v1455 = vshrl.u32 %v1454, 7
    %v1456 = vsub.s32 0, %v1455
    %v1457 = vrot.slane %v1293, %v1456
    %v1458 = vlaneseq
    %v1459 = vshrl.u32 %v1458, 7
    %v1460 = vsub.s32 0, %v1459
    %v1461 = vrot.slane %v1300, %v1460
    %v1464 = vlaneseq
    %v1465 = vshrl.u32 %v1464, 7
    %v1466 = vsub.s32 0, %v1465
    %v1467 = vrot.slane %v1315, %v1466
    %v1468 = vlaneseq
    %v1469 = vshrl.u32 %v1468, 7
    %v1470 = vsub.s32 0, %v1469
    %v1471 = vrot.slane %v1322, %v1470
    %v1474 = vlaneseq
    %v1475 = vshrl.u32 %v1474, 7
    %v1476 = vsub.s32 0, %v1475
    %v1477 = vrot.slane %v1337, %v1476
    %v1478 = vlaneseq
    %v1479 = vshrl.u32 %v1478, 7
    %v1480 = vsub.s32 0, %v1479
    %v1481 = vrot.slane %v1344, %v1480
    %v1484 = vlaneseq
    %v1485 = vshrl.u32 %v1484, 7
    %v1486 = vsub.s32 0, %v1485
    %v1487 = vrot.slane %v1383, %v1486
    %v1488 = vlaneseq
    %v1489 = vshrl.u32 %v1488, 7
    %v1490 = vsub.s32 0, %v1489
    %v1491 = vrot.slane %v1390, %v1490
    %v1494 = vlaneseq
    %v1495 = vshrl.u32 %v1494, 7
    %v1496 = vsub.s32 0, %v1495
    %v1497 = vrot.slane %v1406, %v1496
    %v1498 = vlaneseq
    %v1499 = vshrl.u32 %v1498, 7
    %v1500 = vsub.s32 0, %v1499
    %v1501 = vrot.slane %v1413, %v1500
    %vm1504 = vcmask 1040384
    %v1505 = vsel %vm1504, %v1181, %v1417
    %v1506 = vsel %vm1504, %v1188, %v1421
    %vm1507 = vcmask 1041408
    %v1508 = vsel %vm1507, %v1505, %v1427
    %v1509 = vsel %vm1507, %v1506, %v1431
    %vm1510 = vcmask 1042432
    %v1511 = vsel %vm1510, %v1508, %v1437
    %v1512 = vsel %vm1510, %v1509, %v1441
    %vm1513 = vcmask 1043456
    %v1514 = vsel %vm1513, %v1511, %v1447
    %v1515 = vsel %vm1513, %v1512, %v1451
    %vm1516 = vcmask 1044480
    %v1517 = vsel %vm1516, %v1514, %v1457
    %v1518 = vsel %vm1516, %v1515, %v1461
    %vm1519 = vcmask 1045504
    %v1520 = vsel %vm1519, %v1517, %v1467
    %v1521 = vsel %vm1519, %v1518, %v1471
    %vm1522 = vcmask 1046528
    %v1523 = vsel %vm1522, %v1520, %v1477
    %v1524 = vsel %vm1522, %v1521, %v1481
    %v1525 = vsel %vm1504, %v1359, %v1487
    %v1526 = vsel %vm1504, %v1366, %v1491
    %v1527 = vsel %vm1507, %v1525, %v1497
    %v1528 = vsel %vm1507, %v1526, %v1501
    %v1529 = vlaneseq
    %v1530 = vshrl.u32 %v1529, 7
    %v1531 = vsub.s32 1, %v1530
    %v1532 = vrot.slane %v44, %v1531
    %1534 = vrot.lane.b32.xlu0 %v1532, 96
    %v1535 = vpop.permute.xlu0 %1534
    %v1537 = vmul.f32 %v1523, %v1535
    %v1538 = vmul.f32 %v1527, %v1535
    %v1539 = vmul.f32 %v1524, %v1535
    %v1540 = vmul.f32 %v1528, %v1535
    %1545 = vrot.lane.b32.xlu0 %v1537, 32
    %v1546 = vpop.permute.xlu0 %1545
    %1547 = vrot.lane.b32.xlu0 %v1538, 32
    %v1548 = vpop.permute.xlu0 %1547
    %1549 = vrot.lane.b32.xlu0 %v1539, 32
    %v1550 = vpop.permute.xlu0 %1549
    %1551 = vrot.lane.b32.xlu0 %v1540, 32
    %v1552 = vpop.permute.xlu0 %1551
    %v1557 = vsel %vm46, %v1546, 0.0
    %1558 = vadd.xlane.f32.xlu0 %v1557
    %v1559 = vpop.xlane.xlu0 %1558
    %vm1560 = vcmask 256000
    %v1561 = vsel %vm1560, %v1548, 0.0
    %1562 = vadd.xlane.f32.xlu0 %v1561
    %v1563 = vpop.xlane.xlu0 %1562
    %v1564 = vsel %vm46, %v1550, 0.0
    %1565 = vadd.xlane.f32.xlu0 %v1564
    %v1566 = vpop.xlane.xlu0 %1565
    %v1567 = vsel %vm1560, %v1552, 0.0
    %1568 = vadd.xlane.f32.xlu0 %v1567
    %v1569 = vpop.xlane.xlu0 %1568
    %v1571 = vrot.slane %v44, 2
    %s1572 = vtos %v1571
    %v1573 = vstv %s1572
    %v1575 = vadd.f32 %v1559, %v1573
    %v1576 = vadd.f32 %v1563, %v1573
    %v1577 = vadd.f32 %v1566, %v1573
    %v1578 = vadd.f32 %v1569, %v1573
    %v1583 = vlaneseq
    %v1584 = vand.u32 %v1583, 127
    %v1585 = vlaneseq
    %v1586 = vshrl.u32 %v1585, 7
    %v1587 = vsub.s32 %v1584, %v1586
    %v1588 = vrot.slane %v1575, %v1587
    %v1589 = vadd.s32 %v1584, 4294967288
    %v1590 = vlaneseq
    %v1591 = vshrl.u32 %v1590, 7
    %v1592 = vsub.s32 %v1589, %v1591
    %v1593 = vrot.slane %v1576, %v1592
    %vm1594 = vcmask 130112
    %v1595 = vsel %vm1594, %v1593, %v1588
    %v1596 = vlaneseq
    %v1597 = vshrl.u32 %v1596, 7
    %v1598 = vsub.s32 %v1584, %v1597
    %v1599 = vrot.slane %v1577, %v1598
    %v1600 = vlaneseq
    %v1601 = vshrl.u32 %v1600, 7
    %v1602 = vsub.s32 %v1589, %v1601
    %v1603 = vrot.slane %v1578, %v1602
    %v1604 = vsel %vm1594, %v1603, %v1599
    %vm1605 = vcmask 1041409
    %v1606 = vsel %vm1605, %v1604, %v1595
    %vm1608 = vcmask 82944
    %1609 = vst.msk [vmem:[#allocation7] sm:$0x3] %vm1608, %v1606
    // Predicated region
    $region18: #{tpu_custom_call.1} parent=1 // pred_check
      _
    $region19: #{tpu_custom_call.1} parent=1 // pred_check_branch
      %1611 = sbr.rel (0) target = $region21
    $region20: #{tpu_custom_call.1} parent=1 // pred_region
      %s1613 = ssub.s32 32, 32
      %1614 = vsyncadd [#allocation4], %s1613
      %s1616 = sshll.u32 [#allocation7], 4
      %s1617 = int_to_ptr.vmem [resolvable:$true] %s1616
      %1619 = dma.vmem_to_hbm [thread:$0]  %s1617, 32, %s2, [#allocation4]
    $region21: #{tpu_custom_call.1} parent=1 // pred_fallthru
      _
    // Predicated region
    $region22: #{tpu_custom_call.1} parent=1 // pred_check
      _
    $region23: #{tpu_custom_call.1} parent=1 // pred_check_branch
      %1621 = sbr.rel (0) target = $region25
    $region24: #{tpu_custom_call.1} parent=1 // pred_region
      %1622 = dma.done [#allocation4], 32
    $region25: #{tpu_custom_call.1} parent=1 // pred_fallthru
      _
    %1623 = vsyncpa [#allocation3], 1
    %1624 = vsyncpa [#allocation6], 1
    %1625 = vsyncpa [#allocation4], 1

</llo_original>
